<compile_context>
chip_gen: v6e
topology: v6e:2x2x1
jax: 0.10.0
libtpu: 0.0.40
codegen_flags: <defaults>
</compile_context>

<pallas_src>
import jax
import jax.numpy as jnp
import numpy as np
from jax.experimental import pallas as pl
from jax.experimental.pallas import tpu as pltpu


def _round_up(v, m):
    return (v + m - 1) // m * m


def _device_vmem_bytes():
    try:
        info = pltpu.get_tpu_info()
        cap = getattr(info, "vmem_capacity_bytes", None)
        if cap:
            return int(cap)
    except Exception:
        pass
    return 64 << 20  # conservative default: v7x per-TensorCore VMEM


# ---------------------------------------------------------------------------
# Kernels.  Weights are pre-transposed to [in, out]; their output feature dims
# are zero-padded to multiples of 128.  Activation blocks keep the true
# feature width (block last dim == full array dim), so no K padding or output
# slicing passes exist in the wrapper.
# ---------------------------------------------------------------------------
def _resnet_fc_kernel_shortcut(x_ref, w0_ref, b0_ref, w1_ref, b1_ref, ws_ref, out_ref):
    size_out = out_ref.shape[-1]
    x = x_ref[...]                                   # [tile_n, size_in]
    cdt = w0_ref.dtype                               # bf16 compute dtype

    # net = fc_0(relu(x))
    h = jnp.dot(jnp.maximum(x, 0.0).astype(cdt), w0_ref[...],
                preferred_element_type=jnp.float32) + b0_ref[...]
    # dx = fc_1(relu(net))
    dx = jnp.dot(jnp.maximum(h, 0.0).astype(cdt), w1_ref[...],
                 preferred_element_type=jnp.float32) + b1_ref[...]
    # x_s = shortcut(x)   (Linear, no bias)
    x_s = jnp.dot(x.astype(cdt), ws_ref[...], preferred_element_type=jnp.float32)

    out_ref[...] = (x_s + dx)[:, :size_out].astype(out_ref.dtype)


def _resnet_fc_kernel_identity(x_ref, w0_ref, b0_ref, w1_ref, b1_ref, out_ref):
    size_out = out_ref.shape[-1]
    x = x_ref[...]                                   # [tile_n, size_in == size_out]
    cdt = w0_ref.dtype

    h = jnp.dot(jnp.maximum(x, 0.0).astype(cdt), w0_ref[...],
                preferred_element_type=jnp.float32) + b0_ref[...]
    dx = jnp.dot(jnp.maximum(h, 0.0).astype(cdt), w1_ref[...],
                 preferred_element_type=jnp.float32) + b1_ref[...]

    # size_in == size_out -> identity shortcut: plain VPU add, no MXU matmul.
    out_ref[...] = (x.astype(jnp.float32) + dx[:, :size_out]).astype(out_ref.dtype)


# ---------------------------------------------------------------------------
# One-time parameter preprocessing (cache the result; do NOT redo per forward).
# ---------------------------------------------------------------------------
def prepare_params(w0, b0, w1, b1, ws=None, *, param_dtype=jnp.bfloat16):
    """Weights come in PyTorch [out, in] layout; ws=None iff size_in == size_out."""
    size_h, size_in = w0.shape
    size_out = w1.shape[0]
    if ws is None:
        assert size_in == size_out, "identity shortcut requires size_in == size_out"
    Hp = _round_up(size_h, 128)
    Op = _round_up(size_out, 128)
    f32 = jnp.float32

    def pad_t(w, rows, cols):
        wt = jnp.transpose(w).astype(f32)
        wt = jnp.pad(wt, ((0, rows - wt.shape[0]), (0, cols - wt.shape[1])))
        return wt.astype(param_dtype)

    return dict(
        w0t=pad_t(w0, size_in, Hp),                                    # [in,  Hp]
        b0=jnp.pad(b0.astype(f32), (0, Hp - size_h)).reshape(1, Hp),
        w1t=pad_t(w1, Hp, Op),                                         # [Hp,  Op]
        b1=jnp.pad(b1.astype(f32), (0, Op - size_out)).reshape(1, Op),
        wst=None if ws is None else pad_t(ws, size_in, Op),            # [in,  Op]
        size_in=size_in, size_out=size_out,
    )


def _select_tile_n(n_rows, size_in, size_out, Hp, Op, x_item, out_item,
                   weight_vmem, budget, align):
    best = align
    for cand in (8, 16, 32, 64, 128, 256, 512, 1024):
        if cand % align != 0:
            continue
        need = (weight_vmem
                + 2 * cand * size_in * x_item            # double-buffered x tile
                + 2 * cand * size_out * out_item         # double-buffered out tile
                + 2 * cand * (Hp + Op) * 4)              # f32 intermediates headroom
        if need <= budget:
            best = cand
    # don't allocate a tile much larger than the actual batch
    best = min(best, _round_up(max(n_rows, align), align))
    # keep >= 2 grid steps when there is enough work (megacore / pipelining)
    if n_rows > 256 and pl.cdiv(n_rows, best) < 2:
        best = _round_up(pl.cdiv(n_rows, 2), align)
    return best


# ---------------------------------------------------------------------------
# Forward wrapper.
# ---------------------------------------------------------------------------
def resnet_block_fc(x, params, *, tile_n=None):
    """x: [N, size_in] -> [N, size_out] using precomputed `params`."""
    w0t, b0, w1t, b1, wst = (params["w0t"], params["b0"], params["w1t"],
                             params["b1"], params["wst"])
    size_in, size_out = params["size_in"], params["size_out"]
    N, k = x.shape
    assert k == size_in
    Hp, Op = w0t.shape[1], w1t.shape[1]
    has_shortcut = wst is not None

    p_item = jnp.dtype(w0t.dtype).itemsize
    x_item = jnp.dtype(x.dtype).itemsize
    out_item = x_item
    # single-buffered (grid-invariant) weights + biases
    weight_vmem = ((size_in * Hp + Hp * Op + (size_in * Op if has_shortcut else 0))
                   * p_item + (Hp + Op) * 4)

    vmem_cap = _device_vmem_bytes()
    budget = (vmem_cap * 3) // 4
    # TODO(synk): feature/K-blocked fallback (second 'arbitrary' grid axis with an
    # f32 VMEM accumulator) for layer widths whose whole weights exceed `budget`.
    assert weight_vmem <= budget, "layer too wide for whole-weight VMEM residency"

    align = 8 if x_item >= 4 else (16 if x_item == 2 else 32)
    if tile_n is None:
        tile_n = _select_tile_n(N, size_in, size_out, Hp, Op, x_item, out_item,
                                weight_vmem, budget, align)
    assert tile_n % align == 0
    grid = (pl.cdiv(N, tile_n),)

    need = (weight_vmem
            + 2 * tile_n * size_in * x_item
            + 2 * tile_n * size_out * out_item
            + 2 * tile_n * (Hp + Op) * 4)
    vmem_limit = int(min(vmem_cap - (1 << 20), max(32 << 20, need + (4 << 20))))

    def run(single_buffer_weights):
        def const_spec(shape):
            idx = lambda i: tuple(0 for _ in shape)
            if single_buffer_weights:
                try:
                    return pl.BlockSpec(shape, idx, pipeline_mode=pl.Buffered(1))
                except TypeError:
                    pass
            return pl.BlockSpec(shape, idx)

        in_specs = [
            pl.BlockSpec((tile_n, size_in), lambda i: (i, 0)),  # x rows, pipelined
            const_spec((size_in, Hp)),                          # W0^T  (grid-invariant)
            const_spec((1, Hp)),                                # b0
            const_spec((Hp, Op)),                               # W1^T
            const_spec((1, Op)),                                # b1
        ]
        in_arrays = [x, w0t, b0, w1t, b1]
        if has_shortcut:
            in_specs.append(const_spec((size_in, Op)))          # W_shortcut^T
            in_arrays.append(wst)
            kernel = _resnet_fc_kernel_shortcut
        else:
            kernel = _resnet_fc_kernel_identity

        return pl.pallas_call(
            kernel,
            out_shape=jax.ShapeDtypeStruct((N, size_out), x.dtype),
            grid_spec=pltpu.PrefetchScalarGridSpec(
                num_scalar_prefetch=0,
                grid=grid,
                in_specs=in_specs,
                out_specs=pl.BlockSpec((tile_n, size_out), lambda i: (i, 0)),
            ),
            compiler_params=pltpu.CompilerParams(
                dimension_semantics=("parallel",),
                vmem_limit_bytes=vmem_limit,
            ),
        )(*in_arrays)

    try:
        return run(single_buffer_weights=True)
    except Exception:
        # pipeline_mode / pl.Buffered not supported by this jax build:
        # fall back to default double-buffered grid-invariant weights.
        return run(single_buffer_weights=False)


# ---------------------------------------------------------------------------
# Parameter init mirroring the PyTorch module, and a pure-JAX reference.
# ---------------------------------------------------------------------------
def init_params(key, size_in, size_out, size_h, zero_fc1=True):
    k0w, k0b, k1w, k1b, ksw = jax.random.split(key, 5)
    lim0 = 1.0 / np.sqrt(size_in)
    lim1 = 1.0 / np.sqrt(size_h)
    w0 = jax.random.uniform(k0w, (size_h, size_in), jnp.float32, -lim0, lim0)
    b0 = jax.random.uniform(k0b, (size_h,), jnp.float32, -lim0, lim0)
    if zero_fc1:
        w1 = jnp.zeros((size_out, size_h), jnp.float32)  # nn.init.zeros_(fc_1.weight)
    else:
        w1 = jax.random.uniform(k1w, (size_out, size_h), jnp.float32, -lim1, lim1)
    b1 = jax.random.uniform(k1b, (size_out,), jnp.float32, -lim1, lim1)
    ws = None if size_in == size_out else jax.random.uniform(
        ksw, (size_out, size_in), jnp.float32, -lim0, lim0)
    return w0, b0, w1, b1, ws


def reference_forward(x, w0, b0, w1, b1, ws, param_dtype=jnp.bfloat16):
    # Mirrors the kernel's mixed precision: bf16 operands, f32 accumulation.
    f32 = jnp.float32
    q = lambda a: a.astype(param_dtype).astype(f32)
    hp = jax.lax.Precision.HIGHEST
    xf = x.astype(f32)
    h = jnp.dot(q(jnp.maximum(xf, 0.0)), q(w0).T, precision=hp) + b0.astype(f32)
    dx = jnp.dot(q(jnp.maximum(h, 0.0)), q(w1).T, precision=hp) + b1.astype(f32)
    x_s = jnp.dot(q(xf), q(ws).T, precision=hp) if ws is not None else xf
    return x_s + dx


if __name__ == "__main__":
    key = jax.random.PRNGKey(0)
    ka, kb = jax.random.split(key)

    # Case A: size_in != size_out -> learned Linear shortcut inside the kernel.
    # Ragged batch (300, f32 activations) exercises boundary blocks.
    N, size_in, size_out = 300, 32, 48
    size_h = min(size_in, size_out)
    kxa, kpa = jax.random.split(ka)
    x = jax.random.normal(kxa, (N, size_in), jnp.float32)
    w0, b0, w1, b1, ws = init_params(kpa, size_in, size_out, size_h, zero_fc1=False)
    params = prepare_params(w0, b0, w1, b1, ws)        # cached once per layer
    out = jax.block_until_ready(resnet_block_fc(x, params))
    ref = reference_forward(x, w0, b0, w1, b1, ws)
    np.testing.assert_allclose(np.asarray(out), np.asarray(ref), rtol=1e-2, atol=1e-2)

    # Case B: size_in == size_out -> identity shortcut (no shortcut matmul),
    # fc_1 weight zero-initialized exactly like the PyTorch module;
    # bf16 activations (half the activation DMA bytes).
    N2, size2 = 300, 48
    kxb, kpb = jax.random.split(kb)
    x2 = jax.random.normal(kxb, (N2, size2), jnp.float32).astype(jnp.bfloat16)
    w0b, b0b, w1b, b1b, wsb = init_params(kpb, size2, size2, size2, zero_fc1=True)
    params2 = prepare_params(w0b, b0b, w1b, b1b, wsb)
    out2 = jax.block_until_ready(resnet_block_fc(x2, params2))
    ref2 = reference_forward(x2, w0b, b0b, w1b, b1b, wsb)
    np.testing.assert_allclose(np.asarray(out2).astype(np.float32),
                               np.asarray(ref2), rtol=2e-2, atol=5e-2)

    print("KERNEL_OK")
</pallas_src>

<mosaic_0001>
module attributes {stable_mosaic.version = 11 : i64} {
  func.func @_resnet_fc_kernel_shortcut(%arg0: i32, %arg1: memref<152x32xf32, #tpu.memory_space<vmem>>, %arg2: memref<32x128xbf16, #tpu.memory_space<vmem>>, %arg3: memref<1x128xf32, #tpu.memory_space<vmem>>, %arg4: memref<128x128xbf16, #tpu.memory_space<vmem>>, %arg5: memref<1x128xf32, #tpu.memory_space<vmem>>, %arg6: memref<32x128xbf16, #tpu.memory_space<vmem>>, %arg7: memref<152x48xf32, #tpu.memory_space<vmem>>) attributes {dimension_semantics = [#tpu.dimension_semantics<parallel>], iteration_bounds = array<i64: 2>, scalar_prefetch = 0 : i64, scratch_operands = 0 : i64, tpu.core_type = #tpu.core_type<tc>, window_params = [{transform_indices = @transform_0, window_bounds = array<i64: 152, 32>}, {pipeline_mode = #tpu.pipeline_mode<synchronous>, transform_indices = @transform_1, window_bounds = array<i64: 32, 128>}, {pipeline_mode = #tpu.pipeline_mode<synchronous>, transform_indices = @transform_2, window_bounds = array<i64: 1, 128>}, {pipeline_mode = #tpu.pipeline_mode<synchronous>, transform_indices = @transform_3, window_bounds = array<i64: 128, 128>}, {pipeline_mode = #tpu.pipeline_mode<synchronous>, transform_indices = @transform_4, window_bounds = array<i64: 1, 128>}, {pipeline_mode = #tpu.pipeline_mode<synchronous>, transform_indices = @transform_5, window_bounds = array<i64: 32, 128>}, {transform_indices = @transform_6, window_bounds = array<i64: 152, 48>}]} {
    %c0 = arith.constant 0 : index
    %c0_0 = arith.constant 0 : index
    %0 = vector.load %arg1[%c0, %c0_0] : memref<152x32xf32, #tpu.memory_space<vmem>>, vector<152x32xf32>
    %cst = arith.constant 0.000000e+00 : f32
    %1 = vector.broadcast %cst : f32 to vector<152x32xf32>
    %2 = arith.maximumf %0, %1 : vector<152x32xf32>
    %3 = arith.truncf %2 : vector<152x32xf32> to vector<152x32xbf16>
    %c0_1 = arith.constant 0 : index
    %c0_2 = arith.constant 0 : index
    %4 = vector.load %arg2[%c0_1, %c0_2] : memref<32x128xbf16, #tpu.memory_space<vmem>>, vector<32x128xbf16>
    %cst_3 = arith.constant dense<0.000000e+00> : vector<152x128xf32>
    %5 = tpu.matmul %3, %4, %cst_3 {dimension_numbers = #tpu.dot_dimension_numbers<[1], [0], [0], [1], [0, 0, 1, 1], [], []>} : vector<152x32xbf16>, vector<32x128xbf16>, vector<152x128xf32> -> vector<152x128xf32>
    %c0_4 = arith.constant 0 : index
    %c0_5 = arith.constant 0 : index
    %6 = vector.load %arg3[%c0_4, %c0_5] : memref<1x128xf32, #tpu.memory_space<vmem>>, vector<1x128xf32>
    %7 = vector.broadcast %6 : vector<1x128xf32> to vector<152x128xf32>
    %8 = arith.addf %5, %7 : vector<152x128xf32>
    %cst_6 = arith.constant 0.000000e+00 : f32
    %9 = vector.broadcast %cst_6 : f32 to vector<152x128xf32>
    %10 = arith.maximumf %8, %9 : vector<152x128xf32>
    %11 = arith.truncf %10 : vector<152x128xf32> to vector<152x128xbf16>
    %c0_7 = arith.constant 0 : index
    %c0_8 = arith.constant 0 : index
    %12 = vector.load %arg4[%c0_7, %c0_8] : memref<128x128xbf16, #tpu.memory_space<vmem>>, vector<128x128xbf16>
    %cst_9 = arith.constant dense<0.000000e+00> : vector<152x128xf32>
    %13 = tpu.matmul %11, %12, %cst_9 {dimension_numbers = #tpu.dot_dimension_numbers<[1], [0], [0], [1], [0, 0, 1, 1], [], []>} : vector<152x128xbf16>, vector<128x128xbf16>, vector<152x128xf32> -> vector<152x128xf32>
    %c0_10 = arith.constant 0 : index
    %c0_11 = arith.constant 0 : index
    %14 = vector.load %arg5[%c0_10, %c0_11] : memref<1x128xf32, #tpu.memory_space<vmem>>, vector<1x128xf32>
    %15 = vector.broadcast %14 : vector<1x128xf32> to vector<152x128xf32>
    %16 = arith.addf %13, %15 : vector<152x128xf32>
    %17 = arith.truncf %0 : vector<152x32xf32> to vector<152x32xbf16>
    %c0_12 = arith.constant 0 : index
    %c0_13 = arith.constant 0 : index
    %18 = vector.load %arg6[%c0_12, %c0_13] : memref<32x128xbf16, #tpu.memory_space<vmem>>, vector<32x128xbf16>
    %cst_14 = arith.constant dense<0.000000e+00> : vector<152x128xf32>
    %19 = tpu.matmul %17, %18, %cst_14 {dimension_numbers = #tpu.dot_dimension_numbers<[1], [0], [0], [1], [0, 0, 1, 1], [], []>} : vector<152x32xbf16>, vector<32x128xbf16>, vector<152x128xf32> -> vector<152x128xf32>
    %20 = arith.addf %19, %16 : vector<152x128xf32>
    %21 = vector.extract_strided_slice %20 {offsets = [0, 0], sizes = [152, 48], strides = [1, 1]} : vector<152x128xf32> to vector<152x48xf32>
    %c0_15 = arith.constant 0 : index
    %c0_16 = arith.constant 0 : index
    %22 = vector.load %arg7[%c0_15, %c0_16] : memref<152x48xf32, #tpu.memory_space<vmem>>, vector<152x48xf32>
    tpu.vector_store %arg7[%c0_15, %c0_16], %21 {strides = array<i32>} : memref<152x48xf32, #tpu.memory_space<vmem>>, vector<152x48xf32>,
    return
  }
  func.func @transform_0(%arg0: i32) -> (i32, i32) {
    %c0_i32 = arith.constant 0 : i32
    %c0_i32_0 = arith.constant 0 : i32
    return %arg0, %c0_i32 : i32, i32
  }
  func.func @transform_1(%arg0: i32) -> (i32, i32) {
    %c0_i32 = arith.constant 0 : i32
    %c0_i32_0 = arith.constant 0 : i32
    %c0_i32_1 = arith.constant 0 : i32
    return %c0_i32, %c0_i32_0 : i32, i32
  }
  func.func @transform_2(%arg0: i32) -> (i32, i32) {
    %c0_i32 = arith.constant 0 : i32
    %c0_i32_0 = arith.constant 0 : i32
    %c0_i32_1 = arith.constant 0 : i32
    return %c0_i32, %c0_i32_0 : i32, i32
  }
  func.func @transform_3(%arg0: i32) -> (i32, i32) {
    %c0_i32 = arith.constant 0 : i32
    %c0_i32_0 = arith.constant 0 : i32
    %c0_i32_1 = arith.constant 0 : i32
    return %c0_i32, %c0_i32_0 : i32, i32
  }
  func.func @transform_4(%arg0: i32) -> (i32, i32) {
    %c0_i32 = arith.constant 0 : i32
    %c0_i32_0 = arith.constant 0 : i32
    %c0_i32_1 = arith.constant 0 : i32
    return %c0_i32, %c0_i32_0 : i32, i32
  }
  func.func @transform_5(%arg0: i32) -> (i32, i32) {
    %c0_i32 = arith.constant 0 : i32
    %c0_i32_0 = arith.constant 0 : i32
    %c0_i32_1 = arith.constant 0 : i32
    return %c0_i32, %c0_i32_0 : i32, i32
  }
  func.func @transform_6(%arg0: i32) -> (i32, i32) {
    %c0_i32 = arith.constant 0 : i32
    %c0_i32_0 = arith.constant 0 : i32
    return %arg0, %c0_i32 : i32, i32
  }
}

module attributes {stable_mosaic.version = 11 : i64} {
  func.func @_resnet_fc_kernel_shortcut(%arg0: i32, %arg1: memref<152x32xf32, #tpu.memory_space<vmem>>, %arg2: memref<32x128xbf16, #tpu.memory_space<vmem>>, %arg3: memref<1x128xf32, #tpu.memory_space<vmem>>, %arg4: memref<128x128xbf16, #tpu.memory_space<vmem>>, %arg5: memref<1x128xf32, #tpu.memory_space<vmem>>, %arg6: memref<32x128xbf16, #tpu.memory_space<vmem>>, %arg7: memref<152x48xf32, #tpu.memory_space<vmem>>) attributes {dimension_semantics = [#tpu.dimension_semantics<parallel>], iteration_bounds = array<i64: 2>, scalar_prefetch = 0 : i64, scratch_operands = 0 : i64, tpu.core_type = #tpu.core_type<tc>, window_params = [{transform_indices = @transform_0, window_bounds = array<i64: 152, 32>}, {pipeline_mode = #tpu.pipeline_mode<synchronous>, transform_indices = @transform_1, window_bounds = array<i64: 32, 128>}, {pipeline_mode = #tpu.pipeline_mode<synchronous>, transform_indices = @transform_2, window_bounds = array<i64: 1, 128>}, {pipeline_mode = #tpu.pipeline_mode<synchronous>, transform_indices = @transform_3, window_bounds = array<i64: 128, 128>}, {pipeline_mode = #tpu.pipeline_mode<synchronous>, transform_indices = @transform_4, window_bounds = array<i64: 1, 128>}, {pipeline_mode = #tpu.pipeline_mode<synchronous>, transform_indices = @transform_5, window_bounds = array<i64: 32, 128>}, {transform_indices = @transform_6, window_bounds = array<i64: 152, 48>}]} {
    %c0 = arith.constant 0 : index
    %c0_0 = arith.constant 0 : index
    %0 = vector.load %arg1[%c0, %c0_0] : memref<152x32xf32, #tpu.memory_space<vmem>>, vector<152x32xf32>
    %cst = arith.constant 0.000000e+00 : f32
    %1 = vector.broadcast %cst : f32 to vector<152x32xf32>
    %2 = arith.maximumf %0, %1 : vector<152x32xf32>
    %3 = arith.truncf %2 : vector<152x32xf32> to vector<152x32xbf16>
    %c0_1 = arith.constant 0 : index
    %c0_2 = arith.constant 0 : index
    %4 = vector.load %arg2[%c0_1, %c0_2] : memref<32x128xbf16, #tpu.memory_space<vmem>>, vector<32x128xbf16>
    %cst_3 = arith.constant dense<0.000000e+00> : vector<152x128xf32>
    %5 = tpu.matmul %3, %4, %cst_3 {dimension_numbers = #tpu.dot_dimension_numbers<[1], [0], [0], [1], [0, 0, 1, 1], [], []>} : vector<152x32xbf16>, vector<32x128xbf16>, vector<152x128xf32> -> vector<152x128xf32>
    %c0_4 = arith.constant 0 : index
    %c0_5 = arith.constant 0 : index
    %6 = vector.load %arg3[%c0_4, %c0_5] : memref<1x128xf32, #tpu.memory_space<vmem>>, vector<1x128xf32>
    %7 = vector.broadcast %6 : vector<1x128xf32> to vector<152x128xf32>
    %8 = arith.addf %5, %7 : vector<152x128xf32>
    %cst_6 = arith.constant 0.000000e+00 : f32
    %9 = vector.broadcast %cst_6 : f32 to vector<152x128xf32>
    %10 = arith.maximumf %8, %9 : vector<152x128xf32>
    %11 = arith.truncf %10 : vector<152x128xf32> to vector<152x128xbf16>
    %c0_7 = arith.constant 0 : index
    %c0_8 = arith.constant 0 : index
    %12 = vector.load %arg4[%c0_7, %c0_8] : memref<128x128xbf16, #tpu.memory_space<vmem>>, vector<128x128xbf16>
    %cst_9 = arith.constant dense<0.000000e+00> : vector<152x128xf32>
    %13 = tpu.matmul %11, %12, %cst_9 {dimension_numbers = #tpu.dot_dimension_numbers<[1], [0], [0], [1], [0, 0, 1, 1], [], []>} : vector<152x128xbf16>, vector<128x128xbf16>, vector<152x128xf32> -> vector<152x128xf32>
    %c0_10 = arith.constant 0 : index
    %c0_11 = arith.constant 0 : index
    %14 = vector.load %arg5[%c0_10, %c0_11] : memref<1x128xf32, #tpu.memory_space<vmem>>, vector<1x128xf32>
    %15 = vector.broadcast %14 : vector<1x128xf32> to vector<152x128xf32>
    %16 = arith.addf %13, %15 : vector<152x128xf32>
    %17 = arith.truncf %0 : vector<152x32xf32> to vector<152x32xbf16>
    %c0_12 = arith.constant 0 : index
    %c0_13 = arith.constant 0 : index
    %18 = vector.load %arg6[%c0_12, %c0_13] : memref<32x128xbf16, #tpu.memory_space<vmem>>, vector<32x128xbf16>
    %cst_14 = arith.constant dense<0.000000e+00> : vector<152x128xf32>
    %19 = tpu.matmul %17, %18, %cst_14 {dimension_numbers = #tpu.dot_dimension_numbers<[1], [0], [0], [1], [0, 0, 1, 1], [], []>} : vector<152x32xbf16>, vector<32x128xbf16>, vector<152x128xf32> -> vector<152x128xf32>
    %20 = arith.addf %19, %16 : vector<152x128xf32>
    %21 = vector.extract_strided_slice %20 {offsets = [0, 0], sizes = [152, 48], strides = [1, 1]} : vector<152x128xf32> to vector<152x48xf32>
    %c0_15 = arith.constant 0 : index
    %c0_16 = arith.constant 0 : index
    %22 = vector.load %arg7[%c0_15, %c0_16] : memref<152x48xf32, #tpu.memory_space<vmem>>, vector<152x48xf32>
    tpu.vector_store %arg7[%c0_15, %c0_16], %21 {strides = array<i32>} : memref<152x48xf32, #tpu.memory_space<vmem>>, vector<152x48xf32>,
    return
  }
  func.func @transform_0(%arg0: i32) -> (i32, i32) {
    %c0_i32 = arith.constant 0 : i32
    %c0_i32_0 = arith.constant 0 : i32
    return %arg0, %c0_i32 : i32, i32
  }
  func.func @transform_1(%arg0: i32) -> (i32, i32) {
    %c0_i32 = arith.constant 0 : i32
    %c0_i32_0 = arith.constant 0 : i32
    %c0_i32_1 = arith.constant 0 : i32
    return %c0_i32, %c0_i32_0 : i32, i32
  }
  func.func @transform_2(%arg0: i32) -> (i32, i32) {
    %c0_i32 = arith.constant 0 : i32
    %c0_i32_0 = arith.constant 0 : i32
    %c0_i32_1 = arith.constant 0 : i32
    return %c0_i32, %c0_i32_0 : i32, i32
  }
  func.func @transform_3(%arg0: i32) -> (i32, i32) {
    %c0_i32 = arith.constant 0 : i32
    %c0_i32_0 = arith.constant 0 : i32
    %c0_i32_1 = arith.constant 0 : i32
    return %c0_i32, %c0_i32_0 : i32, i32
  }
  func.func @transform_4(%arg0: i32) -> (i32, i32) {
    %c0_i32 = arith.constant 0 : i32
    %c0_i32_0 = arith.constant 0 : i32
    %c0_i32_1 = arith.constant 0 : i32
    return %c0_i32, %c0_i32_0 : i32, i32
  }
  func.func @transform_5(%arg0: i32) -> (i32, i32) {
    %c0_i32 = arith.constant 0 : i32
    %c0_i32_0 = arith.constant 0 : i32
    %c0_i32_1 = arith.constant 0 : i32
    return %c0_i32, %c0_i32_0 : i32, i32
  }
  func.func @transform_6(%arg0: i32) -> (i32, i32) {
    %c0_i32 = arith.constant 0 : i32
    %c0_i32_0 = arith.constant 0 : i32
    return %arg0, %c0_i32 : i32, i32
  }
}

</mosaic_0001>

<llo_original>
// kernel: tpu_custom_call.1
$region0: #{tpu_custom_call.1}
  #allocation0 [shape = 'u32[]', space=smem, size = 0x4, offset = 0x4, fixed_abs, tag = 'smem constant byte address 0x4 - core index']
  #allocation1 [shape = 'u32[144,128]{1,0:T(1,128)}', space=vmem, size = 0x12000, scoped, tag = 'internal scratch']
  %s0 = inlined_call_operand.vmem [shape: f32[300,32], index: 0, kind: input, shape index: {}]
  %s1 = inlined_call_operand.vmem [shape: bf16[32,128], index: 1, kind: input, shape index: {}]
  %s2 = inlined_call_operand.vmem [shape: f32[1,128], index: 2, kind: input, shape index: {}]
  %s3 = inlined_call_operand.vmem [shape: bf16[128,128], index: 3, kind: input, shape index: {}]
  %s4 = inlined_call_operand.vmem [shape: f32[1,128], index: 4, kind: input, shape index: {}]
  %s5 = inlined_call_operand.vmem [shape: bf16[32,128], index: 5, kind: input, shape index: {}]
  %s6 = inlined_call_operand.vmem [shape: f32[300,48], index: 6, kind: output, shape index: {}]
  %s7 = sld [smem:[#allocation0]]
  $region57: #{tpu_custom_call.1} parent=0
    _
  %s9 = ssub.s32 1, %s7
  %s10 = scalar_select 0, %s9, %s7
  loop: start=0, step=1, limit=4
  $region2: #{tpu_custom_call.1} parent=0 // loop_pre_header
    _
  $region3: #{tpu_custom_call.1} parent=0 // loop_header
    %s12 = sphi 0, %s16
    %p13 = scmp.ge.s32.totalorder %s12, 4
    %s22 = sphi 0, %s24
    %s25 = sphi 0, %s22
    %s26 = sphi 0, %s25
    %s42 = sphi 0, %s26
    %s46 = sphi 0, %s46
    %s48 = sphi 0, %s46
    %s49 = sphi 0, %s48
    %s63 = sphi 0, %s49
    %s67 = sphi 0, %s67
    %s69 = sphi 0, %s67
    %s70 = sphi 0, %s69
    %s84 = sphi 0, %s70
    %s88 = sphi 0, %s88
    %s90 = sphi 0, %s88
    %s91 = sphi 0, %s90
    %s105 = sphi 0, %s91
    %s109 = sphi 0, %s109
    %s111 = sphi 0, %s109
    %s112 = sphi 0, %s111
    %s126 = sphi 0, %s112
    %s130 = sphi 0, %s130
    %s132 = sphi 0, %s130
    %s133 = sphi 0, %s132
    %s147 = sphi 0, %s133
    %s153 = sphi 0, %s155
    %s156 = sphi 0, %s153
    %s157 = sphi 0, %s156
    %s173 = sphi 0, %s157
  $region4: #{tpu_custom_call.1} parent=0 // loop_header_branch
    %15 = sbr.rel (%p13) target = $region8
  $region5: #{tpu_custom_call.1} parent=0 // loop_body
    %s17 = ssub.s32 %s12, 1
    %s18 = ssub.s32 %s12, 2
    %s19 = sadd.s32 %s12, 1
    %s20 = ssub.s32 %s12, %s19
    %p21 = scmp.eq.s32.totalorder %s20, 0
    %s23 = sadd.s32 %s22, 1
    %s24 = scalar_select %p21, %s22, %s23
    %p27 = pneg %p21
    %p28 = scmp.eq.s32.totalorder %s12, 1
    %p29 = por %p27, %p28
    %p30 = scmp.ne.s32.totalorder %s22, %s25
    %p31 = scmp.eq.s32.totalorder %s12, 0
    %p32 = por %p30, %p31
    %p33 = scmp.ne.s32.totalorder %s22, %s25
    %p34 = scmp.eq.s32.totalorder %s17, 1
    %p35 = por %p33, %p34
    %p36 = scmp.ne.s32.totalorder %s25, %s26
    %p37 = scmp.eq.s32.totalorder %s17, 0
    %p38 = por %p36, %p37
    %p39 = scmp.ne.s32.totalorder %s25, %s26
    %p40 = scmp.eq.s32.totalorder %s18, 1
    %p41 = por %p39, %p40
    %p43 = scmp.ne.s32.totalorder %s26, %s42
    %p44 = scmp.eq.s32.totalorder %s18, 0
    %p45 = por %p43, %p44
    %s47 = sadd.s32 %s46, 1
    %p50 = scmp.eq.s32.totalorder %s12, 1
    %p51 = scmp.ne.s32.totalorder %s46, %s48
    %p52 = scmp.eq.s32.totalorder %s12, 0
    %p53 = por %p51, %p52
    %p54 = scmp.ne.s32.totalorder %s46, %s48
    %p55 = scmp.eq.s32.totalorder %s17, 1
    %p56 = por %p54, %p55
    %p57 = scmp.ne.s32.totalorder %s48, %s49
    %p58 = scmp.eq.s32.totalorder %s17, 0
    %p59 = por %p57, %p58
    %p60 = scmp.ne.s32.totalorder %s48, %s49
    %p61 = scmp.eq.s32.totalorder %s18, 1
    %p62 = por %p60, %p61
    %p64 = scmp.ne.s32.totalorder %s49, %s63
    %p65 = scmp.eq.s32.totalorder %s18, 0
    %p66 = por %p64, %p65
    %s68 = sadd.s32 %s67, 1
    %p71 = scmp.eq.s32.totalorder %s12, 1
    %p72 = scmp.ne.s32.totalorder %s67, %s69
    %p73 = scmp.eq.s32.totalorder %s12, 0
    %p74 = por %p72, %p73
    %p75 = scmp.ne.s32.totalorder %s67, %s69
    %p76 = scmp.eq.s32.totalorder %s17, 1
    %p77 = por %p75, %p76
    %p78 = scmp.ne.s32.totalorder %s69, %s70
    %p79 = scmp.eq.s32.totalorder %s17, 0
    %p80 = por %p78, %p79
    %p81 = scmp.ne.s32.totalorder %s69, %s70
    %p82 = scmp.eq.s32.totalorder %s18, 1
    %p83 = por %p81, %p82
    %p85 = scmp.ne.s32.totalorder %s70, %s84
    %p86 = scmp.eq.s32.totalorder %s18, 0
    %p87 = por %p85, %p86
    %s89 = sadd.s32 %s88, 1
    %p92 = scmp.eq.s32.totalorder %s12, 1
    %p93 = scmp.ne.s32.totalorder %s88, %s90
    %p94 = scmp.eq.s32.totalorder %s12, 0
    %p95 = por %p93, %p94
    %p96 = scmp.ne.s32.totalorder %s88, %s90
    %p97 = scmp.eq.s32.totalorder %s17, 1
    %p98 = por %p96, %p97
    %p99 = scmp.ne.s32.totalorder %s90, %s91
    %p100 = scmp.eq.s32.totalorder %s17, 0
    %p101 = por %p99, %p100
    %p102 = scmp.ne.s32.totalorder %s90, %s91
    %p103 = scmp.eq.s32.totalorder %s18, 1
    %p104 = por %p102, %p103
    %p106 = scmp.ne.s32.totalorder %s91, %s105
    %p107 = scmp.eq.s32.totalorder %s18, 0
    %p108 = por %p106, %p107
    %s110 = sadd.s32 %s109, 1
    %p113 = scmp.eq.s32.totalorder %s12, 1
    %p114 = scmp.ne.s32.totalorder %s109, %s111
    %p115 = scmp.eq.s32.totalorder %s12, 0
    %p116 = por %p114, %p115
    %p117 = scmp.ne.s32.totalorder %s109, %s111
    %p118 = scmp.eq.s32.totalorder %s17, 1
    %p119 = por %p117, %p118
    %p120 = scmp.ne.s32.totalorder %s111, %s112
    %p121 = scmp.eq.s32.totalorder %s17, 0
    %p122 = por %p120, %p121
    %p123 = scmp.ne.s32.totalorder %s111, %s112
    %p124 = scmp.eq.s32.totalorder %s18, 1
    %p125 = por %p123, %p124
    %p127 = scmp.ne.s32.totalorder %s112, %s126
    %p128 = scmp.eq.s32.totalorder %s18, 0
    %p129 = por %p127, %p128
    %s131 = sadd.s32 %s130, 1
    %p134 = scmp.eq.s32.totalorder %s12, 1
    %p135 = scmp.ne.s32.totalorder %s130, %s132
    %p136 = scmp.eq.s32.totalorder %s12, 0
    %p137 = por %p135, %p136
    %p138 = scmp.ne.s32.totalorder %s130, %s132
    %p139 = scmp.eq.s32.totalorder %s17, 1
    %p140 = por %p138, %p139
    %p141 = scmp.ne.s32.totalorder %s132, %s133
    %p142 = scmp.eq.s32.totalorder %s17, 0
    %p143 = por %p141, %p142
    %p144 = scmp.ne.s32.totalorder %s132, %s133
    %p145 = scmp.eq.s32.totalorder %s18, 1
    %p146 = por %p144, %p145
    %p148 = scmp.ne.s32.totalorder %s133, %s147
    %p149 = scmp.eq.s32.totalorder %s18, 0
    %p150 = por %p148, %p149
    %s151 = ssub.s32 %s12, %s19
    %p152 = scmp.eq.s32.totalorder %s151, 0
    %s154 = sadd.s32 %s153, 1
    %s155 = scalar_select %p152, %s153, %s154
    %p158 = pneg %p152
    %p159 = scmp.eq.s32.totalorder %s12, 1
    %p160 = por %p158, %p159
    %p161 = scmp.ne.s32.totalorder %s153, %s156
    %p162 = scmp.eq.s32.totalorder %s12, 0
    %p163 = por %p161, %p162
    %p164 = scmp.ne.s32.totalorder %s153, %s156
    %p165 = scmp.eq.s32.totalorder %s17, 1
    %p166 = por %p164, %p165
    %p167 = scmp.ne.s32.totalorder %s156, %s157
    %p168 = scmp.eq.s32.totalorder %s17, 0
    %p169 = por %p167, %p168
    %p170 = scmp.ne.s32.totalorder %s156, %s157
    %p171 = scmp.eq.s32.totalorder %s18, 1
    %p172 = por %p170, %p171
    %p174 = scmp.ne.s32.totalorder %s157, %s173
    %p175 = scmp.eq.s32.totalorder %s18, 0
    %p176 = por %p174, %p175
    %p177 = scmp.le.s32.totalorder 1, %s12
    %p178 = scmp.lt.s32.totalorder %s12, 3
    %p179 = pnand %p177, %p178
    %p180 = pneg %p179
    // Predicated region
    $region9: #{tpu_custom_call.1} parent=5 // pred_check
      _
    $region10: #{tpu_custom_call.1} parent=5 // pred_check_branch
      %182 = sbr.rel (%p179) target = $region12
    $region11: #{tpu_custom_call.1} parent=5 // pred_region
      %s183 = ssub.s32 %s12, 1
      // Predicated region
      $region13: #{tpu_custom_call.1} parent=11 // pred_check
        %p184 = pneg %p59
      $region14: #{tpu_custom_call.1} parent=11 // pred_check_branch
        %186 = sbr.rel (%p184) target = $region16
      $region15: #{tpu_custom_call.1} parent=11 // pred_region
        _
      $region16: #{tpu_custom_call.1} parent=11 // pred_fallthru
        _
      // Predicated region
      $region17: #{tpu_custom_call.1} parent=11 // pred_check
        %p187 = pneg %p80
      $region18: #{tpu_custom_call.1} parent=11 // pred_check_branch
        %189 = sbr.rel (%p187) target = $region20
      $region19: #{tpu_custom_call.1} parent=11 // pred_region
        _
      $region20: #{tpu_custom_call.1} parent=11 // pred_fallthru
        _
      // Predicated region
      $region21: #{tpu_custom_call.1} parent=11 // pred_check
        %p190 = pneg %p101
      $region22: #{tpu_custom_call.1} parent=11 // pred_check_branch
        %192 = sbr.rel (%p190) target = $region24
      $region23: #{tpu_custom_call.1} parent=11 // pred_region
        _
      $region24: #{tpu_custom_call.1} parent=11 // pred_fallthru
        _
      // Predicated region
      $region25: #{tpu_custom_call.1} parent=11 // pred_check
        %p193 = pneg %p122
      $region26: #{tpu_custom_call.1} parent=11 // pred_check_branch
        %195 = sbr.rel (%p193) target = $region28
      $region27: #{tpu_custom_call.1} parent=11 // pred_region
        _
      $region28: #{tpu_custom_call.1} parent=11 // pred_fallthru
        _
      // Predicated region
      $region29: #{tpu_custom_call.1} parent=11 // pred_check
        %p196 = pneg %p143
      $region30: #{tpu_custom_call.1} parent=11 // pred_check_branch
        %198 = sbr.rel (%p196) target = $region32
      $region31: #{tpu_custom_call.1} parent=11 // pred_region
        _
      $region32: #{tpu_custom_call.1} parent=11 // pred_fallthru
        _
    $region12: #{tpu_custom_call.1} parent=5 // pred_fallthru
      _
    %p199 = scmp.lt.s32.totalorder %s12, 2
    // Predicated region
    $region33: #{tpu_custom_call.1} parent=5 // pred_check
      %p200 = pneg %p199
    $region34: #{tpu_custom_call.1} parent=5 // pred_check_branch
      %202 = sbr.rel (%p200) target = $region36
    $region35: #{tpu_custom_call.1} parent=5 // pred_region
      // Predicated region
      $region37: #{tpu_custom_call.1} parent=35 // pred_check
        %p203 = pneg %p32
      $region38: #{tpu_custom_call.1} parent=35 // pred_check_branch
        %205 = sbr.rel (%p203) target = $region40
      $region39: #{tpu_custom_call.1} parent=35 // pred_region
        %s206 = smul.u32 19, %s12
        %p207 = scmp.lt.s32.totalorder %s206, 37
        %s208 = scalar_select %p207, %s206, 37
        %s209 = smul.addr %s208, 8
        %s210 = scalar_lea.vmem %s0, %s209
        %s211 = smul.u32 19, %s12
      $region40: #{tpu_custom_call.1} parent=35 // pred_fallthru
        _
    $region36: #{tpu_custom_call.1} parent=5 // pred_fallthru
      _
    %p212 = scmp.le.s32.totalorder 1, %s12
    %p213 = scmp.lt.s32.totalorder %s12, 3
    %p214 = pnand %p212, %p213
    %p215 = pneg %p214
    // Predicated region
    $region41: #{tpu_custom_call.1} parent=5 // pred_check
      _
    $region42: #{tpu_custom_call.1} parent=5 // pred_check_branch
      %217 = sbr.rel (%p214) target = $region44
    $region43: #{tpu_custom_call.1} parent=5 // pred_region
      %s218 = ssub.s32 %s12, 1
      %s219 = smul.u32 19, %s17
      %p220 = scmp.lt.s32.totalorder %s219, 37
      %s221 = scalar_select %p220, %s219, 37
      %s222 = smul.addr %s221, 8
      %s223 = scalar_lea.vmem %s0, %s222
      %p224 = pneg %p38
      %p225 = pneg %p35
      %p226 = pneg %p59
      %p227 = pneg %p56
      %p228 = pneg %p80
      %p229 = pneg %p77
      %p230 = pneg %p101
      %p231 = pneg %p98
      %p232 = pneg %p122
      %p233 = pneg %p119
      %p234 = pneg %p143
      %p235 = pneg %p140
      %p236 = pneg %p169
      %p237 = pneg %p166
      %s238 = smul.u32 19, %s17
      %p239 = scmp.lt.s32.totalorder %s238, 37
      %s240 = scalar_select %p239, %s238, 37
      %s241 = smul.addr %s240, 8
      %s242 = scalar_lea.vmem %s6, %s241
      %s243 = smul.u32 19, %s17
      %p244 = scmp.lt.s32.totalorder %s243, 37
      %s245 = scalar_select %p244, %s243, 37
      %s246 = smul.addr %s245, 8
      %s247 = scalar_lea.vmem %s0, %s246
      %s248 = smul.u32 19, %s17
      %s249 = smul.u32 19, %s17
      %p250 = scmp.lt.s32.totalorder %s249, 37
      %s251 = scalar_select %p250, %s249, 37
      %s252 = smul.addr %s251, 8
      %s253 = scalar_lea.vmem %s6, %s252
      %s254 = smul.u32 19, %s17
      %v256 = vld [vmem:[%s247] sm:$0xff]
      %v257 = vld [vmem:[%s247 + $0x8] sm:$0xff]
      %v258 = vld [vmem:[%s247 + $0x10] sm:$0xff]
      %v259 = vld [vmem:[%s247 + $0x18] sm:$0xff]
      %v260 = vld [vmem:[%s247 + $0x20] sm:$0xff]
      %v261 = vld [vmem:[%s247 + $0x28] sm:$0xff]
      %v262 = vld [vmem:[%s247 + $0x30] sm:$0xff]
      %v263 = vld [vmem:[%s247 + $0x38] sm:$0xff]
      %v264 = vld [vmem:[%s247 + $0x40] sm:$0xff]
      %v265 = vld [vmem:[%s247 + $0x48] sm:$0xff]
      %v266 = vld [vmem:[%s247 + $0x50] sm:$0xff]
      %v267 = vld [vmem:[%s247 + $0x58] sm:$0xff]
      %v268 = vld [vmem:[%s247 + $0x60] sm:$0xff]
      %v269 = vld [vmem:[%s247 + $0x68] sm:$0xff]
      %v270 = vld [vmem:[%s247 + $0x70] sm:$0xff]
      %v271 = vld [vmem:[%s247 + $0x78] sm:$0xff]
      %v272 = vld [vmem:[%s247 + $0x80] sm:$0xff]
      %v273 = vld [vmem:[%s247 + $0x88] sm:$0xff]
      %v274 = vld [vmem:[%s247 + $0x90] sm:$0xff]
      %v275 = vmax.f32 %v256, 0.0
      %v276 = vmax.f32 %v257, 0.0
      %v277 = vmax.f32 %v258, 0.0
      %v278 = vmax.f32 %v259, 0.0
      %v279 = vmax.f32 %v260, 0.0
      %v280 = vmax.f32 %v261, 0.0
      %v281 = vmax.f32 %v262, 0.0
      %v282 = vmax.f32 %v263, 0.0
      %v283 = vmax.f32 %v264, 0.0
      %v284 = vmax.f32 %v265, 0.0
      %v285 = vmax.f32 %v266, 0.0
      %v286 = vmax.f32 %v267, 0.0
      %v287 = vmax.f32 %v268, 0.0
      %v288 = vmax.f32 %v269, 0.0
      %v289 = vmax.f32 %v270, 0.0
      %v290 = vmax.f32 %v271, 0.0
      %v291 = vmax.f32 %v272, 0.0
      %v292 = vmax.f32 %v273, 0.0
      %v293 = vmax.f32 %v274, 0.0
      %v294 = vpack.c.bf16 %v276, %v275
      %v295 = vpack.c.bf16 %v278, %v277
      %v296 = vpack.c.bf16 %v280, %v279
      %v297 = vpack.c.bf16 %v282, %v281
      %v298 = vpack.c.bf16 %v284, %v283
      %v299 = vpack.c.bf16 %v286, %v285
      %v300 = vpack.c.bf16 %v288, %v287
      %v301 = vpack.c.bf16 %v290, %v289
      %v302 = vpack.c.bf16 %v292, %v291
      %v303 = vpack.c.bf16 %v293, %v293
      %v304 = vld [vmem:[%s1] sm:$0xf]
      %v305 = vld [vmem:[%s1 + $0x4] sm:$0xf]
      %v306 = vld [vmem:[%s1 + $0x8] sm:$0xf]
      %v307 = vld [vmem:[%s1 + $0xc] sm:$0xf]
      %v308 = vld [vmem:[%s2] sm:$0x1]
      %v310 = vlaneseq
      %v311 = vshrl.u32 %v310, 7
      %v312 = vsub.s32 0, %v311
      %v313 = vrot.slane %v308, %v312
      %v319 = vunpack.c.l.b16 %v304
      %v320 = vunpack.c.l.b16 %v305
      %v321 = vunpack.c.l.b16 %v306
      %v322 = vunpack.c.l.b16 %v307
      %v323 = vpack.c.b16 %v320, %v319
      %v324 = vpack.c.b16 %v322, %v321
      %vm327 = vcmask 261120
      %v329 = vsel %vm327, %v294, 0
      %v332 = vsel %vm327, %v295, 0
      %v335 = vsel %vm327, %v296, 0
      %v338 = vsel %vm327, %v297, 0
      %v341 = vsel %vm327, %v298, 0
      %v344 = vsel %vm327, %v299, 0
      %v347 = vsel %vm327, %v300, 0
      %v350 = vsel %vm327, %v301, 0
      %v353 = vsel %vm327, %v302, 0
      %v356 = vsel %vm327, %v303, 0
      %358 = vmatprep.subr.bf16.mxu0 0
      %359 = vmatpush1.bf16.msra.mxu0 0
      %360 = vmatprep.subr.bf16.mxu0 0
      %361 = vmatpush1.bf16.msra.mxu0 0
      %362 = vmatprep.subr.bf16.mxu0 0
      %363 = vmatpush1.bf16.msra.mxu0 0
      %364 = vmatprep.subr.bf16.mxu0 0
      %365 = vmatpush1.bf16.msra.mxu0 0
      %366 = vmatprep.subr.bf16.mxu0 0
      %367 = vmatpush1.bf16.msra.mxu0 0
      %368 = vmatprep.subr.bf16.mxu0 0
      %369 = vmatpush1.bf16.msra.mxu0 0
      %370 = vmatprep.subr.bf16.mxu0 0
      %371 = vmatpush1.bf16.msra.mxu0 %v324
      %372 = vmatprep.subr.bf16.mxu0 0
      %373 = vmatpush1.bf16.msra.mxu0 %v323
      %374 = vmatprep.subr.bf16.mxu0 0
      %375 = vmatpush2.bf16.msra.mxu0 0
      %376 = vmatprep.subr.bf16.mxu0 0
      %377 = vmatpush2.bf16.msra.mxu0 0
      %378 = vmatprep.subr.bf16.mxu0 0
      %379 = vmatpush2.bf16.msra.mxu0 0
      %380 = vmatprep.subr.bf16.mxu0 0
      %381 = vmatpush2.bf16.msra.mxu0 0
      %382 = vmatprep.subr.bf16.mxu0 0
      %383 = vmatpush2.bf16.msra.mxu0 0
      %384 = vmatprep.subr.bf16.mxu0 0
      %385 = vmatpush2.bf16.msra.mxu0 0
      %386 = vmatprep.subr.bf16.mxu0 0
      %387 = vmatpush2.bf16.msra.mxu0 0
      %388 = vmatprep.subr.bf16.mxu0 0
      %389 = vmatpush2.bf16.msra.mxu0 0
      %390 = vmatprep.mubr.bf16.mxu0 0
      %391 = vmatmul.mubr.bf16.gmra.mxu0 %v329
      %v392 = vpop.f32.mrf.mxu0
      %v393 = vadd.f32 %v313, %v392
      %v394 = vpop.f32.mrf.mxu0
      %v395 = vpop.f32.mrf.mxu0
      %v396 = vadd.f32 %v313, %v395
      %v397 = vpop.f32.mrf.mxu0
      %398 = vmatprep.mubr.bf16.mxu0 0
      %399 = vmatmul.mubr.bf16.gmra.mxu0 %v332
      %v400 = vpop.f32.mrf.mxu0
      %v401 = vadd.f32 %v313, %v400
      %v402 = vpop.f32.mrf.mxu0
      %v403 = vpop.f32.mrf.mxu0
      %v404 = vadd.f32 %v313, %v403
      %v405 = vpop.f32.mrf.mxu0
      %406 = vmatprep.mubr.bf16.mxu0 0
      %407 = vmatmul.mubr.bf16.gmra.mxu0 %v335
      %v408 = vpop.f32.mrf.mxu0
      %v409 = vadd.f32 %v313, %v408
      %v410 = vpop.f32.mrf.mxu0
      %v411 = vpop.f32.mrf.mxu0
      %v412 = vadd.f32 %v313, %v411
      %v413 = vpop.f32.mrf.mxu0
      %414 = vmatprep.mubr.bf16.mxu0 0
      %415 = vmatmul.mubr.bf16.gmra.mxu0 %v338
      %v416 = vpop.f32.mrf.mxu0
      %v417 = vadd.f32 %v313, %v416
      %v418 = vpop.f32.mrf.mxu0
      %v419 = vpop.f32.mrf.mxu0
      %v420 = vadd.f32 %v313, %v419
      %v421 = vpop.f32.mrf.mxu0
      %422 = vmatprep.mubr.bf16.mxu0 0
      %423 = vmatmul.mubr.bf16.gmra.mxu0 %v341
      %v424 = vpop.f32.mrf.mxu0
      %v425 = vadd.f32 %v313, %v424
      %v426 = vpop.f32.mrf.mxu0
      %v427 = vpop.f32.mrf.mxu0
      %v428 = vadd.f32 %v313, %v427
      %v429 = vpop.f32.mrf.mxu0
      %430 = vmatprep.mubr.bf16.mxu0 0
      %431 = vmatmul.mubr.bf16.gmra.mxu0 %v344
      %v432 = vpop.f32.mrf.mxu0
      %v433 = vadd.f32 %v313, %v432
      %v434 = vpop.f32.mrf.mxu0
      %v435 = vpop.f32.mrf.mxu0
      %v436 = vadd.f32 %v313, %v435
      %v437 = vpop.f32.mrf.mxu0
      %438 = vmatprep.mubr.bf16.mxu0 0
      %439 = vmatmul.mubr.bf16.gmra.mxu0 %v347
      %v440 = vpop.f32.mrf.mxu0
      %v441 = vadd.f32 %v313, %v440
      %v442 = vpop.f32.mrf.mxu0
      %v443 = vpop.f32.mrf.mxu0
      %v444 = vadd.f32 %v313, %v443
      %v445 = vpop.f32.mrf.mxu0
      %446 = vmatprep.mubr.bf16.mxu0 0
      %447 = vmatmul.mubr.bf16.gmra.mxu0 %v350
      %v448 = vpop.f32.mrf.mxu0
      %v449 = vadd.f32 %v313, %v448
      %v450 = vpop.f32.mrf.mxu0
      %v451 = vpop.f32.mrf.mxu0
      %v452 = vadd.f32 %v313, %v451
      %v453 = vpop.f32.mrf.mxu0
      %454 = vmatprep.mubr.bf16.mxu0 0
      %455 = vmatmul.mubr.bf16.gmra.mxu0 %v353
      %v456 = vpop.f32.mrf.mxu0
      %v457 = vadd.f32 %v313, %v456
      %v458 = vpop.f32.mrf.mxu0
      %v459 = vpop.f32.mrf.mxu0
      %v460 = vadd.f32 %v313, %v459
      %v461 = vpop.f32.mrf.mxu0
      %462 = vmatprep.mubr.bf16.mxu0 0
      %463 = vmatmul.mubr.bf16.gmra.mxu0 %v356
      %v464 = vpop.f32.mrf.mxu0
      %v465 = vadd.f32 %v313, %v464
      %v466 = vpop.f32.mrf.mxu0
      %v467 = vpop.f32.mrf.mxu0
      %v468 = vpop.f32.mrf.mxu0
      %469 = vdwg.mxu0
      %v470 = vmax.f32 %v393, 0.0
      %v471 = vmax.f32 %v396, 0.0
      %v472 = vmax.f32 %v401, 0.0
      %v473 = vmax.f32 %v404, 0.0
      %v474 = vmax.f32 %v409, 0.0
      %v475 = vmax.f32 %v412, 0.0
      %v476 = vmax.f32 %v417, 0.0
      %v477 = vmax.f32 %v420, 0.0
      %v478 = vmax.f32 %v425, 0.0
      %v479 = vmax.f32 %v428, 0.0
      %v480 = vmax.f32 %v433, 0.0
      %v481 = vmax.f32 %v436, 0.0
      %v482 = vmax.f32 %v441, 0.0
      %v483 = vmax.f32 %v444, 0.0
      %v484 = vmax.f32 %v449, 0.0
      %v485 = vmax.f32 %v452, 0.0
      %v486 = vmax.f32 %v457, 0.0
      %v487 = vmax.f32 %v460, 0.0
      %v488 = vmax.f32 %v465, 0.0
      %v489 = vpack.c.bf16 %v471, %v470
      %v490 = vpack.c.bf16 %v473, %v472
      %v491 = vpack.c.bf16 %v475, %v474
      %v492 = vpack.c.bf16 %v477, %v476
      %v493 = vpack.c.bf16 %v479, %v478
      %v494 = vpack.c.bf16 %v481, %v480
      %v495 = vpack.c.bf16 %v483, %v482
      %v496 = vpack.c.bf16 %v485, %v484
      %v497 = vpack.c.bf16 %v487, %v486
      %v498 = vpack.c.bf16 %v488, %v488
      %v499 = vld [vmem:[%s3] sm:$0xf]
      %v500 = vld [vmem:[%s3 + $0x4] sm:$0xf]
      %v501 = vld [vmem:[%s3 + $0x8] sm:$0xf]
      %v502 = vld [vmem:[%s3 + $0xc] sm:$0xf]
      %v503 = vld [vmem:[%s3 + $0x10] sm:$0xf]
      %v504 = vld [vmem:[%s3 + $0x14] sm:$0xf]
      %v505 = vld [vmem:[%s3 + $0x18] sm:$0xf]
      %v506 = vld [vmem:[%s3 + $0x1c] sm:$0xf]
      %v507 = vld [vmem:[%s3 + $0x20] sm:$0xf]
      %v508 = vld [vmem:[%s3 + $0x24] sm:$0xf]
      %v509 = vld [vmem:[%s3 + $0x28] sm:$0xf]
      %v510 = vld [vmem:[%s3 + $0x2c] sm:$0xf]
      %v511 = vld [vmem:[%s3 + $0x30] sm:$0xf]
      %v512 = vld [vmem:[%s3 + $0x34] sm:$0xf]
      %v513 = vld [vmem:[%s3 + $0x38] sm:$0xf]
      %v514 = vld [vmem:[%s3 + $0x3c] sm:$0xf]
      %v515 = vld [vmem:[%s4] sm:$0x1]
      %v517 = vlaneseq
      %v518 = vshrl.u32 %v517, 7
      %v519 = vsub.s32 0, %v518
      %v520 = vrot.slane %v515, %v519
      %v538 = vunpack.c.l.b16 %v499
      %v539 = vunpack.c.l.b16 %v500
      %v540 = vunpack.c.l.b16 %v501
      %v541 = vunpack.c.l.b16 %v502
      %v542 = vunpack.c.l.b16 %v503
      %v543 = vunpack.c.l.b16 %v504
      %v544 = vunpack.c.l.b16 %v505
      %v545 = vunpack.c.l.b16 %v506
      %v546 = vunpack.c.l.b16 %v507
      %v547 = vunpack.c.l.b16 %v508
      %v548 = vunpack.c.l.b16 %v509
      %v549 = vunpack.c.l.b16 %v510
      %v550 = vunpack.c.l.b16 %v511
      %v551 = vunpack.c.l.b16 %v512
      %v552 = vunpack.c.l.b16 %v513
      %v553 = vunpack.c.l.b16 %v514
      %v554 = vpack.c.b16 %v539, %v538
      %v555 = vpack.c.b16 %v541, %v540
      %v556 = vpack.c.b16 %v543, %v542
      %v557 = vpack.c.b16 %v545, %v544
      %v558 = vpack.c.b16 %v547, %v546
      %v559 = vpack.c.b16 %v549, %v548
      %v560 = vpack.c.b16 %v551, %v550
      %v561 = vpack.c.b16 %v553, %v552
      %570 = vmatprep.subr.bf16.mxu0 0
      %571 = vmatpush1.bf16.msra.mxu0 %v561
      %572 = vmatprep.subr.bf16.mxu0 0
      %573 = vmatpush1.bf16.msra.mxu0 %v560
      %574 = vmatprep.subr.bf16.mxu0 0
      %575 = vmatpush1.bf16.msra.mxu0 %v559
      %576 = vmatprep.subr.bf16.mxu0 0
      %577 = vmatpush1.bf16.msra.mxu0 %v558
      %578 = vmatprep.subr.bf16.mxu0 0
      %579 = vmatpush1.bf16.msra.mxu0 %v557
      %580 = vmatprep.subr.bf16.mxu0 0
      %581 = vmatpush1.bf16.msra.mxu0 %v556
      %582 = vmatprep.subr.bf16.mxu0 0
      %583 = vmatpush1.bf16.msra.mxu0 %v555
      %584 = vmatprep.subr.bf16.mxu0 0
      %585 = vmatpush1.bf16.msra.mxu0 %v554
      %586 = vmatprep.subr.bf16.mxu0 0
      %587 = vmatpush2.bf16.msra.mxu0 0
      %588 = vmatprep.subr.bf16.mxu0 0
      %589 = vmatpush2.bf16.msra.mxu0 0
      %590 = vmatprep.subr.bf16.mxu0 0
      %591 = vmatpush2.bf16.msra.mxu0 0
      %592 = vmatprep.subr.bf16.mxu0 0
      %593 = vmatpush2.bf16.msra.mxu0 0
      %594 = vmatprep.subr.bf16.mxu0 0
      %595 = vmatpush2.bf16.msra.mxu0 0
      %596 = vmatprep.subr.bf16.mxu0 0
      %597 = vmatpush2.bf16.msra.mxu0 0
      %598 = vmatprep.subr.bf16.mxu0 0
      %599 = vmatpush2.bf16.msra.mxu0 0
      %600 = vmatprep.subr.bf16.mxu0 0
      %601 = vmatpush2.bf16.msra.mxu0 0
      %602 = vmatprep.mubr.bf16.mxu0 0
      %603 = vmatmul.mubr.bf16.gmra.mxu0 %v489
      %v604 = vpop.f32.mrf.mxu0
      %v605 = vadd.f32 %v520, %v604
      %v606 = vpop.f32.mrf.mxu0
      %v607 = vpop.f32.mrf.mxu0
      %v608 = vadd.f32 %v520, %v607
      %v609 = vpop.f32.mrf.mxu0
      %610 = vmatprep.mubr.bf16.mxu0 0
      %611 = vmatmul.mubr.bf16.gmra.mxu0 %v490
      %v612 = vpop.f32.mrf.mxu0
      %v613 = vadd.f32 %v520, %v612
      %v614 = vpop.f32.mrf.mxu0
      %v615 = vpop.f32.mrf.mxu0
      %v616 = vadd.f32 %v520, %v615
      %v617 = vpop.f32.mrf.mxu0
      %618 = vmatprep.mubr.bf16.mxu0 0
      %619 = vmatmul.mubr.bf16.gmra.mxu0 %v491
      %v620 = vpop.f32.mrf.mxu0
      %v621 = vadd.f32 %v520, %v620
      %v622 = vpop.f32.mrf.mxu0
      %v623 = vpop.f32.mrf.mxu0
      %v624 = vadd.f32 %v520, %v623
      %v625 = vpop.f32.mrf.mxu0
      %626 = vmatprep.mubr.bf16.mxu0 0
      %627 = vmatmul.mubr.bf16.gmra.mxu0 %v492
      %v628 = vpop.f32.mrf.mxu0
      %v629 = vadd.f32 %v520, %v628
      %v630 = vpop.f32.mrf.mxu0
      %v631 = vpop.f32.mrf.mxu0
      %v632 = vadd.f32 %v520, %v631
      %v633 = vpop.f32.mrf.mxu0
      %634 = vmatprep.mubr.bf16.mxu0 0
      %635 = vmatmul.mubr.bf16.gmra.mxu0 %v493
      %v636 = vpop.f32.mrf.mxu0
      %v637 = vadd.f32 %v520, %v636
      %v638 = vpop.f32.mrf.mxu0
      %v639 = vpop.f32.mrf.mxu0
      %v640 = vadd.f32 %v520, %v639
      %v641 = vpop.f32.mrf.mxu0
      %642 = vmatprep.mubr.bf16.mxu0 0
      %643 = vmatmul.mubr.bf16.gmra.mxu0 %v494
      %v644 = vpop.f32.mrf.mxu0
      %v645 = vadd.f32 %v520, %v644
      %v646 = vpop.f32.mrf.mxu0
      %v647 = vpop.f32.mrf.mxu0
      %v648 = vadd.f32 %v520, %v647
      %v649 = vpop.f32.mrf.mxu0
      %650 = vmatprep.mubr.bf16.mxu0 0
      %651 = vmatmul.mubr.bf16.gmra.mxu0 %v495
      %v652 = vpop.f32.mrf.mxu0
      %v653 = vadd.f32 %v520, %v652
      %v654 = vpop.f32.mrf.mxu0
      %v655 = vpop.f32.mrf.mxu0
      %v656 = vadd.f32 %v520, %v655
      %v657 = vpop.f32.mrf.mxu0
      %658 = vmatprep.mubr.bf16.mxu0 0
      %659 = vmatmul.mubr.bf16.gmra.mxu0 %v496
      %v660 = vpop.f32.mrf.mxu0
      %v661 = vadd.f32 %v520, %v660
      %v662 = vpop.f32.mrf.mxu0
      %v663 = vpop.f32.mrf.mxu0
      %v664 = vadd.f32 %v520, %v663
      %v665 = vpop.f32.mrf.mxu0
      %666 = vmatprep.mubr.bf16.mxu0 0
      %667 = vmatmul.mubr.bf16.gmra.mxu0 %v497
      %v668 = vpop.f32.mrf.mxu0
      %v669 = vadd.f32 %v520, %v668
      %v670 = vpop.f32.mrf.mxu0
      %v671 = vpop.f32.mrf.mxu0
      %v672 = vadd.f32 %v520, %v671
      %v673 = vpop.f32.mrf.mxu0
      %674 = vmatprep.mubr.bf16.mxu0 0
      %675 = vmatmul.mubr.bf16.gmra.mxu0 %v498
      %v676 = vpop.f32.mrf.mxu0
      %v677 = vadd.f32 %v520, %v676
      %v678 = vpop.f32.mrf.mxu0
      %v679 = vpop.f32.mrf.mxu0
      %v680 = vpop.f32.mrf.mxu0
      %681 = vdwg.mxu0
      %v682 = vpack.c.bf16 %v257, %v256
      %v683 = vpack.c.bf16 %v259, %v258
      %v684 = vpack.c.bf16 %v261, %v260
      %v685 = vpack.c.bf16 %v263, %v262
      %v686 = vpack.c.bf16 %v265, %v264
      %v687 = vpack.c.bf16 %v267, %v266
      %v688 = vpack.c.bf16 %v269, %v268
      %v689 = vpack.c.bf16 %v271, %v270
      %v690 = vpack.c.bf16 %v273, %v272
      %v691 = vpack.c.bf16 %v274, %v274
      %v692 = vld [vmem:[%s5] sm:$0xf]
      %v693 = vld [vmem:[%s5 + $0x4] sm:$0xf]
      %v694 = vld [vmem:[%s5 + $0x8] sm:$0xf]
      %v695 = vld [vmem:[%s5 + $0xc] sm:$0xf]
      %v700 = vunpack.c.l.b16 %v692
      %v701 = vunpack.c.l.b16 %v693
      %v702 = vunpack.c.l.b16 %v694
      %v703 = vunpack.c.l.b16 %v695
      %v704 = vpack.c.b16 %v701, %v700
      %v705 = vpack.c.b16 %v703, %v702
      %v709 = vsel %vm327, %v682, 0
      %v712 = vsel %vm327, %v683, 0
      %v715 = vsel %vm327, %v684, 0
      %v718 = vsel %vm327, %v685, 0
      %v721 = vsel %vm327, %v686, 0
      %v724 = vsel %vm327, %v687, 0
      %v727 = vsel %vm327, %v688, 0
      %v730 = vsel %vm327, %v689, 0
      %v733 = vsel %vm327, %v690, 0
      %v736 = vsel %vm327, %v691, 0
      %738 = vmatprep.subr.bf16.mxu0 0
      %739 = vmatpush1.bf16.msra.mxu0 0
      %740 = vmatprep.subr.bf16.mxu0 0
      %741 = vmatpush1.bf16.msra.mxu0 0
      %742 = vmatprep.subr.bf16.mxu0 0
      %743 = vmatpush1.bf16.msra.mxu0 0
      %744 = vmatprep.subr.bf16.mxu0 0
      %745 = vmatpush1.bf16.msra.mxu0 0
      %746 = vmatprep.subr.bf16.mxu0 0
      %747 = vmatpush1.bf16.msra.mxu0 0
      %748 = vmatprep.subr.bf16.mxu0 0
      %749 = vmatpush1.bf16.msra.mxu0 0
      %750 = vmatprep.subr.bf16.mxu0 0
      %751 = vmatpush1.bf16.msra.mxu0 %v705
      %752 = vmatprep.subr.bf16.mxu0 0
      %753 = vmatpush1.bf16.msra.mxu0 %v704
      %754 = vmatprep.subr.bf16.mxu0 0
      %755 = vmatpush2.bf16.msra.mxu0 0
      %756 = vmatprep.subr.bf16.mxu0 0
      %757 = vmatpush2.bf16.msra.mxu0 0
      %758 = vmatprep.subr.bf16.mxu0 0
      %759 = vmatpush2.bf16.msra.mxu0 0
      %760 = vmatprep.subr.bf16.mxu0 0
      %761 = vmatpush2.bf16.msra.mxu0 0
      %762 = vmatprep.subr.bf16.mxu0 0
      %763 = vmatpush2.bf16.msra.mxu0 0
      %764 = vmatprep.subr.bf16.mxu0 0
      %765 = vmatpush2.bf16.msra.mxu0 0
      %766 = vmatprep.subr.bf16.mxu0 0
      %767 = vmatpush2.bf16.msra.mxu0 0
      %768 = vmatprep.subr.bf16.mxu0 0
      %769 = vmatpush2.bf16.msra.mxu0 0
      %770 = vmatprep.mubr.bf16.mxu0 0
      %771 = vmatmul.mubr.bf16.gmra.mxu0 %v709
      %v772 = vpop.f32.mrf.mxu0
      %v773 = vadd.f32 %v605, %v772
      %v774 = vpop.f32.mrf.mxu0
      %v775 = vpop.f32.mrf.mxu0
      %v776 = vadd.f32 %v608, %v775
      %v777 = vpop.f32.mrf.mxu0
      %778 = vmatprep.mubr.bf16.mxu0 0
      %779 = vmatmul.mubr.bf16.gmra.mxu0 %v712
      %v780 = vpop.f32.mrf.mxu0
      %v781 = vadd.f32 %v613, %v780
      %v782 = vpop.f32.mrf.mxu0
      %v783 = vpop.f32.mrf.mxu0
      %v784 = vadd.f32 %v616, %v783
      %v785 = vpop.f32.mrf.mxu0
      %786 = vmatprep.mubr.bf16.mxu0 0
      %787 = vmatmul.mubr.bf16.gmra.mxu0 %v715
      %v788 = vpop.f32.mrf.mxu0
      %v789 = vadd.f32 %v621, %v788
      %v790 = vpop.f32.mrf.mxu0
      %v791 = vpop.f32.mrf.mxu0
      %v792 = vadd.f32 %v624, %v791
      %v793 = vpop.f32.mrf.mxu0
      %794 = vmatprep.mubr.bf16.mxu0 0
      %795 = vmatmul.mubr.bf16.gmra.mxu0 %v718
      %v796 = vpop.f32.mrf.mxu0
      %v797 = vadd.f32 %v629, %v796
      %v798 = vpop.f32.mrf.mxu0
      %v799 = vpop.f32.mrf.mxu0
      %v800 = vadd.f32 %v632, %v799
      %v801 = vpop.f32.mrf.mxu0
      %802 = vmatprep.mubr.bf16.mxu0 0
      %803 = vmatmul.mubr.bf16.gmra.mxu0 %v721
      %v804 = vpop.f32.mrf.mxu0
      %v805 = vadd.f32 %v637, %v804
      %v806 = vpop.f32.mrf.mxu0
      %v807 = vpop.f32.mrf.mxu0
      %v808 = vadd.f32 %v640, %v807
      %v809 = vpop.f32.mrf.mxu0
      %810 = vmatprep.mubr.bf16.mxu0 0
      %811 = vmatmul.mubr.bf16.gmra.mxu0 %v724
      %v812 = vpop.f32.mrf.mxu0
      %v813 = vadd.f32 %v645, %v812
      %v814 = vpop.f32.mrf.mxu0
      %v815 = vpop.f32.mrf.mxu0
      %v816 = vadd.f32 %v648, %v815
      %v817 = vpop.f32.mrf.mxu0
      %818 = vmatprep.mubr.bf16.mxu0 0
      %819 = vmatmul.mubr.bf16.gmra.mxu0 %v727
      %v820 = vpop.f32.mrf.mxu0
      %v821 = vadd.f32 %v653, %v820
      %v822 = vpop.f32.mrf.mxu0
      %v823 = vpop.f32.mrf.mxu0
      %v824 = vadd.f32 %v656, %v823
      %v825 = vpop.f32.mrf.mxu0
      %826 = vmatprep.mubr.bf16.mxu0 0
      %827 = vmatmul.mubr.bf16.gmra.mxu0 %v730
      %v828 = vpop.f32.mrf.mxu0
      %v829 = vadd.f32 %v661, %v828
      %v830 = vpop.f32.mrf.mxu0
      %v831 = vpop.f32.mrf.mxu0
      %v832 = vadd.f32 %v664, %v831
      %v833 = vpop.f32.mrf.mxu0
      %834 = vmatprep.mubr.bf16.mxu0 0
      %835 = vmatmul.mubr.bf16.gmra.mxu0 %v733
      %v836 = vpop.f32.mrf.mxu0
      %v837 = vadd.f32 %v669, %v836
      %v838 = vpop.f32.mrf.mxu0
      %v839 = vpop.f32.mrf.mxu0
      %v840 = vadd.f32 %v672, %v839
      %v841 = vpop.f32.mrf.mxu0
      %842 = vmatprep.mubr.bf16.mxu0 0
      %843 = vmatmul.mubr.bf16.gmra.mxu0 %v736
      %v844 = vpop.f32.mrf.mxu0
      %v845 = vadd.f32 %v677, %v844
      %v846 = vpop.f32.mrf.mxu0
      %v847 = vpop.f32.mrf.mxu0
      %v848 = vpop.f32.mrf.mxu0
      %849 = vdwg.mxu0
      %vm850 = vcmask 392192
      %851 = vst.msk [vmem:[%s253] sm:$0xff] %vm850, %v773
      %852 = vst.msk [vmem:[%s253 + $0x8] sm:$0xff] %vm850, %v776
      %853 = vst.msk [vmem:[%s253 + $0x10] sm:$0xff] %vm850, %v781
      %854 = vst.msk [vmem:[%s253 + $0x18] sm:$0xff] %vm850, %v784
      %855 = vst.msk [vmem:[%s253 + $0x20] sm:$0xff] %vm850, %v789
      %856 = vst.msk [vmem:[%s253 + $0x28] sm:$0xff] %vm850, %v792
      %857 = vst.msk [vmem:[%s253 + $0x30] sm:$0xff] %vm850, %v797
      %858 = vst.msk [vmem:[%s253 + $0x38] sm:$0xff] %vm850, %v800
      %859 = vst.msk [vmem:[%s253 + $0x40] sm:$0xff] %vm850, %v805
      %860 = vst.msk [vmem:[%s253 + $0x48] sm:$0xff] %vm850, %v808
      %861 = vst.msk [vmem:[%s253 + $0x50] sm:$0xff] %vm850, %v813
      %862 = vst.msk [vmem:[%s253 + $0x58] sm:$0xff] %vm850, %v816
      %863 = vst.msk [vmem:[%s253 + $0x60] sm:$0xff] %vm850, %v821
      %864 = vst.msk [vmem:[%s253 + $0x68] sm:$0xff] %vm850, %v824
      %865 = vst.msk [vmem:[%s253 + $0x70] sm:$0xff] %vm850, %v829
      %866 = vst.msk [vmem:[%s253 + $0x78] sm:$0xff] %vm850, %v832
      %867 = vst.msk [vmem:[%s253 + $0x80] sm:$0xff] %vm850, %v837
      %868 = vst.msk [vmem:[%s253 + $0x88] sm:$0xff] %vm850, %v840
      %869 = vst.msk [vmem:[%s253 + $0x90] sm:$0xff] %vm850, %v845
      %s870 = smul.u32 19, %s17
      %p871 = scmp.lt.s32.totalorder %s870, 37
      %s872 = scalar_select %p871, %s870, 37
      %s873 = smul.addr %s872, 8
      %s874 = scalar_lea.vmem %s6, %s873
      // Predicated region
      $region45: #{tpu_custom_call.1} parent=43 // pred_check
        %p875 = pneg %p166
      $region46: #{tpu_custom_call.1} parent=43 // pred_check_branch
        %877 = sbr.rel (%p875) target = $region48
      $region47: #{tpu_custom_call.1} parent=43 // pred_region
        %s878 = smul.u32 19, %s17
      $region48: #{tpu_custom_call.1} parent=43 // pred_fallthru
        _
    $region44: #{tpu_custom_call.1} parent=5 // pred_fallthru
      _
    %p879 = scmp.le.s32.totalorder 2, %s12
    // Predicated region
    $region49: #{tpu_custom_call.1} parent=5 // pred_check
      %p880 = pneg %p879
    $region50: #{tpu_custom_call.1} parent=5 // pred_check_branch
      %882 = sbr.rel (%p880) target = $region52
    $region51: #{tpu_custom_call.1} parent=5 // pred_region
      %s883 = ssub.s32 %s12, 2
      // Predicated region
      $region53: #{tpu_custom_call.1} parent=51 // pred_check
        %p884 = pneg %p172
      $region54: #{tpu_custom_call.1} parent=51 // pred_check_branch
        %886 = sbr.rel (%p884) target = $region56
      $region55: #{tpu_custom_call.1} parent=51 // pred_region
        %s887 = smul.u32 19, %s18
        %p888 = scmp.lt.s32.totalorder %s887, 37
        %s889 = scalar_select %p888, %s887, 37
        %s890 = smul.addr %s889, 8
        %s891 = scalar_lea.vmem %s6, %s890
      $region56: #{tpu_custom_call.1} parent=51 // pred_fallthru
        _
    $region52: #{tpu_custom_call.1} parent=5 // pred_fallthru
      _
  $region6: #{tpu_custom_call.1} parent=0 // loop_footer
    %s16 = sadd.s32 1, %s12
  $region7: #{tpu_custom_call.1} parent=0 // loop_footer_branch
    %11 = sbr.rel target = $region3
  $region8: #{tpu_custom_call.1} parent=0 // loop_exit
    _

// kernel: tpu_custom_call.1
$region0: #{tpu_custom_call.1}
  #allocation0 [shape = 'u32[]', space=smem, size = 0x4, offset = 0x4, fixed_abs, tag = 'smem constant byte address 0x4 - core index']
  #allocation1 [shape = 'u32[144,128]{1,0:T(1,128)}', space=vmem, size = 0x12000, scoped, tag = 'internal scratch']
  %s0 = inlined_call_operand.vmem [shape: f32[300,32], index: 0, kind: input, shape index: {}]
  %s1 = inlined_call_operand.vmem [shape: bf16[32,128], index: 1, kind: input, shape index: {}]
  %s2 = inlined_call_operand.vmem [shape: f32[1,128], index: 2, kind: input, shape index: {}]
  %s3 = inlined_call_operand.vmem [shape: bf16[128,128], index: 3, kind: input, shape index: {}]
  %s4 = inlined_call_operand.vmem [shape: f32[1,128], index: 4, kind: input, shape index: {}]
  %s5 = inlined_call_operand.vmem [shape: bf16[32,128], index: 5, kind: input, shape index: {}]
  %s6 = inlined_call_operand.vmem [shape: f32[300,48], index: 6, kind: output, shape index: {}]
  %s7 = sld [smem:[#allocation0]]
  $region57: #{tpu_custom_call.1} parent=0
    _
  %s9 = ssub.s32 1, %s7
  %s10 = scalar_select 0, %s9, %s7
  loop: start=0, step=1, limit=4
  $region2: #{tpu_custom_call.1} parent=0 // loop_pre_header
    _
  $region3: #{tpu_custom_call.1} parent=0 // loop_header
    %s12 = sphi 0, %s16
    %p13 = scmp.ge.s32.totalorder %s12, 4
    %s22 = sphi 0, %s24
    %s25 = sphi 0, %s22
    %s26 = sphi 0, %s25
    %s42 = sphi 0, %s26
    %s46 = sphi 0, %s46
    %s48 = sphi 0, %s46
    %s49 = sphi 0, %s48
    %s63 = sphi 0, %s49
    %s67 = sphi 0, %s67
    %s69 = sphi 0, %s67
    %s70 = sphi 0, %s69
    %s84 = sphi 0, %s70
    %s88 = sphi 0, %s88
    %s90 = sphi 0, %s88
    %s91 = sphi 0, %s90
    %s105 = sphi 0, %s91
    %s109 = sphi 0, %s109
    %s111 = sphi 0, %s109
    %s112 = sphi 0, %s111
    %s126 = sphi 0, %s112
    %s130 = sphi 0, %s130
    %s132 = sphi 0, %s130
    %s133 = sphi 0, %s132
    %s147 = sphi 0, %s133
    %s153 = sphi 0, %s155
    %s156 = sphi 0, %s153
    %s157 = sphi 0, %s156
    %s173 = sphi 0, %s157
  $region4: #{tpu_custom_call.1} parent=0 // loop_header_branch
    %15 = sbr.rel (%p13) target = $region8
  $region5: #{tpu_custom_call.1} parent=0 // loop_body
    %s17 = ssub.s32 %s12, 1
    %s18 = ssub.s32 %s12, 2
    %s19 = sadd.s32 %s12, 1
    %s20 = ssub.s32 %s12, %s19
    %p21 = scmp.eq.s32.totalorder %s20, 0
    %s23 = sadd.s32 %s22, 1
    %s24 = scalar_select %p21, %s22, %s23
    %p27 = pneg %p21
    %p28 = scmp.eq.s32.totalorder %s12, 1
    %p29 = por %p27, %p28
    %p30 = scmp.ne.s32.totalorder %s22, %s25
    %p31 = scmp.eq.s32.totalorder %s12, 0
    %p32 = por %p30, %p31
    %p33 = scmp.ne.s32.totalorder %s22, %s25
    %p34 = scmp.eq.s32.totalorder %s17, 1
    %p35 = por %p33, %p34
    %p36 = scmp.ne.s32.totalorder %s25, %s26
    %p37 = scmp.eq.s32.totalorder %s17, 0
    %p38 = por %p36, %p37
    %p39 = scmp.ne.s32.totalorder %s25, %s26
    %p40 = scmp.eq.s32.totalorder %s18, 1
    %p41 = por %p39, %p40
    %p43 = scmp.ne.s32.totalorder %s26, %s42
    %p44 = scmp.eq.s32.totalorder %s18, 0
    %p45 = por %p43, %p44
    %s47 = sadd.s32 %s46, 1
    %p50 = scmp.eq.s32.totalorder %s12, 1
    %p51 = scmp.ne.s32.totalorder %s46, %s48
    %p52 = scmp.eq.s32.totalorder %s12, 0
    %p53 = por %p51, %p52
    %p54 = scmp.ne.s32.totalorder %s46, %s48
    %p55 = scmp.eq.s32.totalorder %s17, 1
    %p56 = por %p54, %p55
    %p57 = scmp.ne.s32.totalorder %s48, %s49
    %p58 = scmp.eq.s32.totalorder %s17, 0
    %p59 = por %p57, %p58
    %p60 = scmp.ne.s32.totalorder %s48, %s49
    %p61 = scmp.eq.s32.totalorder %s18, 1
    %p62 = por %p60, %p61
    %p64 = scmp.ne.s32.totalorder %s49, %s63
    %p65 = scmp.eq.s32.totalorder %s18, 0
    %p66 = por %p64, %p65
    %s68 = sadd.s32 %s67, 1
    %p71 = scmp.eq.s32.totalorder %s12, 1
    %p72 = scmp.ne.s32.totalorder %s67, %s69
    %p73 = scmp.eq.s32.totalorder %s12, 0
    %p74 = por %p72, %p73
    %p75 = scmp.ne.s32.totalorder %s67, %s69
    %p76 = scmp.eq.s32.totalorder %s17, 1
    %p77 = por %p75, %p76
    %p78 = scmp.ne.s32.totalorder %s69, %s70
    %p79 = scmp.eq.s32.totalorder %s17, 0
    %p80 = por %p78, %p79
    %p81 = scmp.ne.s32.totalorder %s69, %s70
    %p82 = scmp.eq.s32.totalorder %s18, 1
    %p83 = por %p81, %p82
    %p85 = scmp.ne.s32.totalorder %s70, %s84
    %p86 = scmp.eq.s32.totalorder %s18, 0
    %p87 = por %p85, %p86
    %s89 = sadd.s32 %s88, 1
    %p92 = scmp.eq.s32.totalorder %s12, 1
    %p93 = scmp.ne.s32.totalorder %s88, %s90
    %p94 = scmp.eq.s32.totalorder %s12, 0
    %p95 = por %p93, %p94
    %p96 = scmp.ne.s32.totalorder %s88, %s90
    %p97 = scmp.eq.s32.totalorder %s17, 1
    %p98 = por %p96, %p97
    %p99 = scmp.ne.s32.totalorder %s90, %s91
    %p100 = scmp.eq.s32.totalorder %s17, 0
    %p101 = por %p99, %p100
    %p102 = scmp.ne.s32.totalorder %s90, %s91
    %p103 = scmp.eq.s32.totalorder %s18, 1
    %p104 = por %p102, %p103
    %p106 = scmp.ne.s32.totalorder %s91, %s105
    %p107 = scmp.eq.s32.totalorder %s18, 0
    %p108 = por %p106, %p107
    %s110 = sadd.s32 %s109, 1
    %p113 = scmp.eq.s32.totalorder %s12, 1
    %p114 = scmp.ne.s32.totalorder %s109, %s111
    %p115 = scmp.eq.s32.totalorder %s12, 0
    %p116 = por %p114, %p115
    %p117 = scmp.ne.s32.totalorder %s109, %s111
    %p118 = scmp.eq.s32.totalorder %s17, 1
    %p119 = por %p117, %p118
    %p120 = scmp.ne.s32.totalorder %s111, %s112
    %p121 = scmp.eq.s32.totalorder %s17, 0
    %p122 = por %p120, %p121
    %p123 = scmp.ne.s32.totalorder %s111, %s112
    %p124 = scmp.eq.s32.totalorder %s18, 1
    %p125 = por %p123, %p124
    %p127 = scmp.ne.s32.totalorder %s112, %s126
    %p128 = scmp.eq.s32.totalorder %s18, 0
    %p129 = por %p127, %p128
    %s131 = sadd.s32 %s130, 1
    %p134 = scmp.eq.s32.totalorder %s12, 1
    %p135 = scmp.ne.s32.totalorder %s130, %s132
    %p136 = scmp.eq.s32.totalorder %s12, 0
    %p137 = por %p135, %p136
    %p138 = scmp.ne.s32.totalorder %s130, %s132
    %p139 = scmp.eq.s32.totalorder %s17, 1
    %p140 = por %p138, %p139
    %p141 = scmp.ne.s32.totalorder %s132, %s133
    %p142 = scmp.eq.s32.totalorder %s17, 0
    %p143 = por %p141, %p142
    %p144 = scmp.ne.s32.totalorder %s132, %s133
    %p145 = scmp.eq.s32.totalorder %s18, 1
    %p146 = por %p144, %p145
    %p148 = scmp.ne.s32.totalorder %s133, %s147
    %p149 = scmp.eq.s32.totalorder %s18, 0
    %p150 = por %p148, %p149
    %s151 = ssub.s32 %s12, %s19
    %p152 = scmp.eq.s32.totalorder %s151, 0
    %s154 = sadd.s32 %s153, 1
    %s155 = scalar_select %p152, %s153, %s154
    %p158 = pneg %p152
    %p159 = scmp.eq.s32.totalorder %s12, 1
    %p160 = por %p158, %p159
    %p161 = scmp.ne.s32.totalorder %s153, %s156
    %p162 = scmp.eq.s32.totalorder %s12, 0
    %p163 = por %p161, %p162
    %p164 = scmp.ne.s32.totalorder %s153, %s156
    %p165 = scmp.eq.s32.totalorder %s17, 1
    %p166 = por %p164, %p165
    %p167 = scmp.ne.s32.totalorder %s156, %s157
    %p168 = scmp.eq.s32.totalorder %s17, 0
    %p169 = por %p167, %p168
    %p170 = scmp.ne.s32.totalorder %s156, %s157
    %p171 = scmp.eq.s32.totalorder %s18, 1
    %p172 = por %p170, %p171
    %p174 = scmp.ne.s32.totalorder %s157, %s173
    %p175 = scmp.eq.s32.totalorder %s18, 0
    %p176 = por %p174, %p175
    %p177 = scmp.le.s32.totalorder 1, %s12
    %p178 = scmp.lt.s32.totalorder %s12, 3
    %p179 = pnand %p177, %p178
    %p180 = pneg %p179
    // Predicated region
    $region9: #{tpu_custom_call.1} parent=5 // pred_check
      _
    $region10: #{tpu_custom_call.1} parent=5 // pred_check_branch
      %182 = sbr.rel (%p179) target = $region12
    $region11: #{tpu_custom_call.1} parent=5 // pred_region
      %s183 = ssub.s32 %s12, 1
      // Predicated region
      $region13: #{tpu_custom_call.1} parent=11 // pred_check
        %p184 = pneg %p59
      $region14: #{tpu_custom_call.1} parent=11 // pred_check_branch
        %186 = sbr.rel (%p184) target = $region16
      $region15: #{tpu_custom_call.1} parent=11 // pred_region
        _
      $region16: #{tpu_custom_call.1} parent=11 // pred_fallthru
        _
      // Predicated region
      $region17: #{tpu_custom_call.1} parent=11 // pred_check
        %p187 = pneg %p80
      $region18: #{tpu_custom_call.1} parent=11 // pred_check_branch
        %189 = sbr.rel (%p187) target = $region20
      $region19: #{tpu_custom_call.1} parent=11 // pred_region
        _
      $region20: #{tpu_custom_call.1} parent=11 // pred_fallthru
        _
      // Predicated region
      $region21: #{tpu_custom_call.1} parent=11 // pred_check
        %p190 = pneg %p101
      $region22: #{tpu_custom_call.1} parent=11 // pred_check_branch
        %192 = sbr.rel (%p190) target = $region24
      $region23: #{tpu_custom_call.1} parent=11 // pred_region
        _
      $region24: #{tpu_custom_call.1} parent=11 // pred_fallthru
        _
      // Predicated region
      $region25: #{tpu_custom_call.1} parent=11 // pred_check
        %p193 = pneg %p122
      $region26: #{tpu_custom_call.1} parent=11 // pred_check_branch
        %195 = sbr.rel (%p193) target = $region28
      $region27: #{tpu_custom_call.1} parent=11 // pred_region
        _
      $region28: #{tpu_custom_call.1} parent=11 // pred_fallthru
        _
      // Predicated region
      $region29: #{tpu_custom_call.1} parent=11 // pred_check
        %p196 = pneg %p143
      $region30: #{tpu_custom_call.1} parent=11 // pred_check_branch
        %198 = sbr.rel (%p196) target = $region32
      $region31: #{tpu_custom_call.1} parent=11 // pred_region
        _
      $region32: #{tpu_custom_call.1} parent=11 // pred_fallthru
        _
    $region12: #{tpu_custom_call.1} parent=5 // pred_fallthru
      _
    %p199 = scmp.lt.s32.totalorder %s12, 2
    // Predicated region
    $region33: #{tpu_custom_call.1} parent=5 // pred_check
      %p200 = pneg %p199
    $region34: #{tpu_custom_call.1} parent=5 // pred_check_branch
      %202 = sbr.rel (%p200) target = $region36
    $region35: #{tpu_custom_call.1} parent=5 // pred_region
      // Predicated region
      $region37: #{tpu_custom_call.1} parent=35 // pred_check
        %p203 = pneg %p32
      $region38: #{tpu_custom_call.1} parent=35 // pred_check_branch
        %205 = sbr.rel (%p203) target = $region40
      $region39: #{tpu_custom_call.1} parent=35 // pred_region
        %s206 = smul.u32 19, %s12
        %p207 = scmp.lt.s32.totalorder %s206, 37
        %s208 = scalar_select %p207, %s206, 37
        %s209 = smul.addr %s208, 8
        %s210 = scalar_lea.vmem %s0, %s209
        %s211 = smul.u32 19, %s12
      $region40: #{tpu_custom_call.1} parent=35 // pred_fallthru
        _
    $region36: #{tpu_custom_call.1} parent=5 // pred_fallthru
      _
    %p212 = scmp.le.s32.totalorder 1, %s12
    %p213 = scmp.lt.s32.totalorder %s12, 3
    %p214 = pnand %p212, %p213
    %p215 = pneg %p214
    // Predicated region
    $region41: #{tpu_custom_call.1} parent=5 // pred_check
      _
    $region42: #{tpu_custom_call.1} parent=5 // pred_check_branch
      %217 = sbr.rel (%p214) target = $region44
    $region43: #{tpu_custom_call.1} parent=5 // pred_region
      %s218 = ssub.s32 %s12, 1
      %s219 = smul.u32 19, %s17
      %p220 = scmp.lt.s32.totalorder %s219, 37
      %s221 = scalar_select %p220, %s219, 37
      %s222 = smul.addr %s221, 8
      %s223 = scalar_lea.vmem %s0, %s222
      %p224 = pneg %p38
      %p225 = pneg %p35
      %p226 = pneg %p59
      %p227 = pneg %p56
      %p228 = pneg %p80
      %p229 = pneg %p77
      %p230 = pneg %p101
      %p231 = pneg %p98
      %p232 = pneg %p122
      %p233 = pneg %p119
      %p234 = pneg %p143
      %p235 = pneg %p140
      %p236 = pneg %p169
      %p237 = pneg %p166
      %s238 = smul.u32 19, %s17
      %p239 = scmp.lt.s32.totalorder %s238, 37
      %s240 = scalar_select %p239, %s238, 37
      %s241 = smul.addr %s240, 8
      %s242 = scalar_lea.vmem %s6, %s241
      %s243 = smul.u32 19, %s17
      %p244 = scmp.lt.s32.totalorder %s243, 37
      %s245 = scalar_select %p244, %s243, 37
      %s246 = smul.addr %s245, 8
      %s247 = scalar_lea.vmem %s0, %s246
      %s248 = smul.u32 19, %s17
      %s249 = smul.u32 19, %s17
      %p250 = scmp.lt.s32.totalorder %s249, 37
      %s251 = scalar_select %p250, %s249, 37
      %s252 = smul.addr %s251, 8
      %s253 = scalar_lea.vmem %s6, %s252
      %s254 = smul.u32 19, %s17
      %v256 = vld [vmem:[%s247] sm:$0xff]
      %v257 = vld [vmem:[%s247 + $0x8] sm:$0xff]
      %v258 = vld [vmem:[%s247 + $0x10] sm:$0xff]
      %v259 = vld [vmem:[%s247 + $0x18] sm:$0xff]
      %v260 = vld [vmem:[%s247 + $0x20] sm:$0xff]
      %v261 = vld [vmem:[%s247 + $0x28] sm:$0xff]
      %v262 = vld [vmem:[%s247 + $0x30] sm:$0xff]
      %v263 = vld [vmem:[%s247 + $0x38] sm:$0xff]
      %v264 = vld [vmem:[%s247 + $0x40] sm:$0xff]
      %v265 = vld [vmem:[%s247 + $0x48] sm:$0xff]
      %v266 = vld [vmem:[%s247 + $0x50] sm:$0xff]
      %v267 = vld [vmem:[%s247 + $0x58] sm:$0xff]
      %v268 = vld [vmem:[%s247 + $0x60] sm:$0xff]
      %v269 = vld [vmem:[%s247 + $0x68] sm:$0xff]
      %v270 = vld [vmem:[%s247 + $0x70] sm:$0xff]
      %v271 = vld [vmem:[%s247 + $0x78] sm:$0xff]
      %v272 = vld [vmem:[%s247 + $0x80] sm:$0xff]
      %v273 = vld [vmem:[%s247 + $0x88] sm:$0xff]
      %v274 = vld [vmem:[%s247 + $0x90] sm:$0xff]
      %v275 = vmax.f32 %v256, 0.0
      %v276 = vmax.f32 %v257, 0.0
      %v277 = vmax.f32 %v258, 0.0
      %v278 = vmax.f32 %v259, 0.0
      %v279 = vmax.f32 %v260, 0.0
      %v280 = vmax.f32 %v261, 0.0
      %v281 = vmax.f32 %v262, 0.0
      %v282 = vmax.f32 %v263, 0.0
      %v283 = vmax.f32 %v264, 0.0
      %v284 = vmax.f32 %v265, 0.0
      %v285 = vmax.f32 %v266, 0.0
      %v286 = vmax.f32 %v267, 0.0
      %v287 = vmax.f32 %v268, 0.0
      %v288 = vmax.f32 %v269, 0.0
      %v289 = vmax.f32 %v270, 0.0
      %v290 = vmax.f32 %v271, 0.0
      %v291 = vmax.f32 %v272, 0.0
      %v292 = vmax.f32 %v273, 0.0
      %v293 = vmax.f32 %v274, 0.0
      %v294 = vpack.c.bf16 %v276, %v275
      %v295 = vpack.c.bf16 %v278, %v277
      %v296 = vpack.c.bf16 %v280, %v279
      %v297 = vpack.c.bf16 %v282, %v281
      %v298 = vpack.c.bf16 %v284, %v283
      %v299 = vpack.c.bf16 %v286, %v285
      %v300 = vpack.c.bf16 %v288, %v287
      %v301 = vpack.c.bf16 %v290, %v289
      %v302 = vpack.c.bf16 %v292, %v291
      %v303 = vpack.c.bf16 %v293, %v293
      %v304 = vld [vmem:[%s1] sm:$0xf]
      %v305 = vld [vmem:[%s1 + $0x4] sm:$0xf]
      %v306 = vld [vmem:[%s1 + $0x8] sm:$0xf]
      %v307 = vld [vmem:[%s1 + $0xc] sm:$0xf]
      %v308 = vld [vmem:[%s2] sm:$0x1]
      %v310 = vlaneseq
      %v311 = vshrl.u32 %v310, 7
      %v312 = vsub.s32 0, %v311
      %v313 = vrot.slane %v308, %v312
      %v319 = vunpack.c.l.b16 %v304
      %v320 = vunpack.c.l.b16 %v305
      %v321 = vunpack.c.l.b16 %v306
      %v322 = vunpack.c.l.b16 %v307
      %v323 = vpack.c.b16 %v320, %v319
      %v324 = vpack.c.b16 %v322, %v321
      %vm327 = vcmask 261120
      %v329 = vsel %vm327, %v294, 0
      %v332 = vsel %vm327, %v295, 0
      %v335 = vsel %vm327, %v296, 0
      %v338 = vsel %vm327, %v297, 0
      %v341 = vsel %vm327, %v298, 0
      %v344 = vsel %vm327, %v299, 0
      %v347 = vsel %vm327, %v300, 0
      %v350 = vsel %vm327, %v301, 0
      %v353 = vsel %vm327, %v302, 0
      %v356 = vsel %vm327, %v303, 0
      %358 = vmatprep.subr.bf16.mxu0 0
      %359 = vmatpush1.bf16.msra.mxu0 0
      %360 = vmatprep.subr.bf16.mxu0 0
      %361 = vmatpush1.bf16.msra.mxu0 0
      %362 = vmatprep.subr.bf16.mxu0 0
      %363 = vmatpush1.bf16.msra.mxu0 0
      %364 = vmatprep.subr.bf16.mxu0 0
      %365 = vmatpush1.bf16.msra.mxu0 0
      %366 = vmatprep.subr.bf16.mxu0 0
      %367 = vmatpush1.bf16.msra.mxu0 0
      %368 = vmatprep.subr.bf16.mxu0 0
      %369 = vmatpush1.bf16.msra.mxu0 0
      %370 = vmatprep.subr.bf16.mxu0 0
      %371 = vmatpush1.bf16.msra.mxu0 %v324
      %372 = vmatprep.subr.bf16.mxu0 0
      %373 = vmatpush1.bf16.msra.mxu0 %v323
      %374 = vmatprep.subr.bf16.mxu0 0
      %375 = vmatpush2.bf16.msra.mxu0 0
      %376 = vmatprep.subr.bf16.mxu0 0
      %377 = vmatpush2.bf16.msra.mxu0 0
      %378 = vmatprep.subr.bf16.mxu0 0
      %379 = vmatpush2.bf16.msra.mxu0 0
      %380 = vmatprep.subr.bf16.mxu0 0
      %381 = vmatpush2.bf16.msra.mxu0 0
      %382 = vmatprep.subr.bf16.mxu0 0
      %383 = vmatpush2.bf16.msra.mxu0 0
      %384 = vmatprep.subr.bf16.mxu0 0
      %385 = vmatpush2.bf16.msra.mxu0 0
      %386 = vmatprep.subr.bf16.mxu0 0
      %387 = vmatpush2.bf16.msra.mxu0 0
      %388 = vmatprep.subr.bf16.mxu0 0
      %389 = vmatpush2.bf16.msra.mxu0 0
      %390 = vmatprep.mubr.bf16.mxu0 0
      %391 = vmatmul.mubr.bf16.gmra.mxu0 %v329
      %v392 = vpop.f32.mrf.mxu0
      %v393 = vadd.f32 %v313, %v392
      %v394 = vpop.f32.mrf.mxu0
      %v395 = vpop.f32.mrf.mxu0
      %v396 = vadd.f32 %v313, %v395
      %v397 = vpop.f32.mrf.mxu0
      %398 = vmatprep.mubr.bf16.mxu0 0
      %399 = vmatmul.mubr.bf16.gmra.mxu0 %v332
      %v400 = vpop.f32.mrf.mxu0
      %v401 = vadd.f32 %v313, %v400
      %v402 = vpop.f32.mrf.mxu0
      %v403 = vpop.f32.mrf.mxu0
      %v404 = vadd.f32 %v313, %v403
      %v405 = vpop.f32.mrf.mxu0
      %406 = vmatprep.mubr.bf16.mxu0 0
      %407 = vmatmul.mubr.bf16.gmra.mxu0 %v335
      %v408 = vpop.f32.mrf.mxu0
      %v409 = vadd.f32 %v313, %v408
      %v410 = vpop.f32.mrf.mxu0
      %v411 = vpop.f32.mrf.mxu0
      %v412 = vadd.f32 %v313, %v411
      %v413 = vpop.f32.mrf.mxu0
      %414 = vmatprep.mubr.bf16.mxu0 0
      %415 = vmatmul.mubr.bf16.gmra.mxu0 %v338
      %v416 = vpop.f32.mrf.mxu0
      %v417 = vadd.f32 %v313, %v416
      %v418 = vpop.f32.mrf.mxu0
      %v419 = vpop.f32.mrf.mxu0
      %v420 = vadd.f32 %v313, %v419
      %v421 = vpop.f32.mrf.mxu0
      %422 = vmatprep.mubr.bf16.mxu0 0
      %423 = vmatmul.mubr.bf16.gmra.mxu0 %v341
      %v424 = vpop.f32.mrf.mxu0
      %v425 = vadd.f32 %v313, %v424
      %v426 = vpop.f32.mrf.mxu0
      %v427 = vpop.f32.mrf.mxu0
      %v428 = vadd.f32 %v313, %v427
      %v429 = vpop.f32.mrf.mxu0
      %430 = vmatprep.mubr.bf16.mxu0 0
      %431 = vmatmul.mubr.bf16.gmra.mxu0 %v344
      %v432 = vpop.f32.mrf.mxu0
      %v433 = vadd.f32 %v313, %v432
      %v434 = vpop.f32.mrf.mxu0
      %v435 = vpop.f32.mrf.mxu0
      %v436 = vadd.f32 %v313, %v435
      %v437 = vpop.f32.mrf.mxu0
      %438 = vmatprep.mubr.bf16.mxu0 0
      %439 = vmatmul.mubr.bf16.gmra.mxu0 %v347
      %v440 = vpop.f32.mrf.mxu0
      %v441 = vadd.f32 %v313, %v440
      %v442 = vpop.f32.mrf.mxu0
      %v443 = vpop.f32.mrf.mxu0
      %v444 = vadd.f32 %v313, %v443
      %v445 = vpop.f32.mrf.mxu0
      %446 = vmatprep.mubr.bf16.mxu0 0
      %447 = vmatmul.mubr.bf16.gmra.mxu0 %v350
      %v448 = vpop.f32.mrf.mxu0
      %v449 = vadd.f32 %v313, %v448
      %v450 = vpop.f32.mrf.mxu0
      %v451 = vpop.f32.mrf.mxu0
      %v452 = vadd.f32 %v313, %v451
      %v453 = vpop.f32.mrf.mxu0
      %454 = vmatprep.mubr.bf16.mxu0 0
      %455 = vmatmul.mubr.bf16.gmra.mxu0 %v353
      %v456 = vpop.f32.mrf.mxu0
      %v457 = vadd.f32 %v313, %v456
      %v458 = vpop.f32.mrf.mxu0
      %v459 = vpop.f32.mrf.mxu0
      %v460 = vadd.f32 %v313, %v459
      %v461 = vpop.f32.mrf.mxu0
      %462 = vmatprep.mubr.bf16.mxu0 0
      %463 = vmatmul.mubr.bf16.gmra.mxu0 %v356
      %v464 = vpop.f32.mrf.mxu0
      %v465 = vadd.f32 %v313, %v464
      %v466 = vpop.f32.mrf.mxu0
      %v467 = vpop.f32.mrf.mxu0
      %v468 = vpop.f32.mrf.mxu0
      %469 = vdwg.mxu0
      %v470 = vmax.f32 %v393, 0.0
      %v471 = vmax.f32 %v396, 0.0
      %v472 = vmax.f32 %v401, 0.0
      %v473 = vmax.f32 %v404, 0.0
      %v474 = vmax.f32 %v409, 0.0
      %v475 = vmax.f32 %v412, 0.0
      %v476 = vmax.f32 %v417, 0.0
      %v477 = vmax.f32 %v420, 0.0
      %v478 = vmax.f32 %v425, 0.0
      %v479 = vmax.f32 %v428, 0.0
      %v480 = vmax.f32 %v433, 0.0
      %v481 = vmax.f32 %v436, 0.0
      %v482 = vmax.f32 %v441, 0.0
      %v483 = vmax.f32 %v444, 0.0
      %v484 = vmax.f32 %v449, 0.0
      %v485 = vmax.f32 %v452, 0.0
      %v486 = vmax.f32 %v457, 0.0
      %v487 = vmax.f32 %v460, 0.0
      %v488 = vmax.f32 %v465, 0.0
      %v489 = vpack.c.bf16 %v471, %v470
      %v490 = vpack.c.bf16 %v473, %v472
      %v491 = vpack.c.bf16 %v475, %v474
      %v492 = vpack.c.bf16 %v477, %v476
      %v493 = vpack.c.bf16 %v479, %v478
      %v494 = vpack.c.bf16 %v481, %v480
      %v495 = vpack.c.bf16 %v483, %v482
      %v496 = vpack.c.bf16 %v485, %v484
      %v497 = vpack.c.bf16 %v487, %v486
      %v498 = vpack.c.bf16 %v488, %v488
      %v499 = vld [vmem:[%s3] sm:$0xf]
      %v500 = vld [vmem:[%s3 + $0x4] sm:$0xf]
      %v501 = vld [vmem:[%s3 + $0x8] sm:$0xf]
      %v502 = vld [vmem:[%s3 + $0xc] sm:$0xf]
      %v503 = vld [vmem:[%s3 + $0x10] sm:$0xf]
      %v504 = vld [vmem:[%s3 + $0x14] sm:$0xf]
      %v505 = vld [vmem:[%s3 + $0x18] sm:$0xf]
      %v506 = vld [vmem:[%s3 + $0x1c] sm:$0xf]
      %v507 = vld [vmem:[%s3 + $0x20] sm:$0xf]
      %v508 = vld [vmem:[%s3 + $0x24] sm:$0xf]
      %v509 = vld [vmem:[%s3 + $0x28] sm:$0xf]
      %v510 = vld [vmem:[%s3 + $0x2c] sm:$0xf]
      %v511 = vld [vmem:[%s3 + $0x30] sm:$0xf]
      %v512 = vld [vmem:[%s3 + $0x34] sm:$0xf]
      %v513 = vld [vmem:[%s3 + $0x38] sm:$0xf]
      %v514 = vld [vmem:[%s3 + $0x3c] sm:$0xf]
      %v515 = vld [vmem:[%s4] sm:$0x1]
      %v517 = vlaneseq
      %v518 = vshrl.u32 %v517, 7
      %v519 = vsub.s32 0, %v518
      %v520 = vrot.slane %v515, %v519
      %v538 = vunpack.c.l.b16 %v499
      %v539 = vunpack.c.l.b16 %v500
      %v540 = vunpack.c.l.b16 %v501
      %v541 = vunpack.c.l.b16 %v502
      %v542 = vunpack.c.l.b16 %v503
      %v543 = vunpack.c.l.b16 %v504
      %v544 = vunpack.c.l.b16 %v505
      %v545 = vunpack.c.l.b16 %v506
      %v546 = vunpack.c.l.b16 %v507
      %v547 = vunpack.c.l.b16 %v508
      %v548 = vunpack.c.l.b16 %v509
      %v549 = vunpack.c.l.b16 %v510
      %v550 = vunpack.c.l.b16 %v511
      %v551 = vunpack.c.l.b16 %v512
      %v552 = vunpack.c.l.b16 %v513
      %v553 = vunpack.c.l.b16 %v514
      %v554 = vpack.c.b16 %v539, %v538
      %v555 = vpack.c.b16 %v541, %v540
      %v556 = vpack.c.b16 %v543, %v542
      %v557 = vpack.c.b16 %v545, %v544
      %v558 = vpack.c.b16 %v547, %v546
      %v559 = vpack.c.b16 %v549, %v548
      %v560 = vpack.c.b16 %v551, %v550
      %v561 = vpack.c.b16 %v553, %v552
      %570 = vmatprep.subr.bf16.mxu0 0
      %571 = vmatpush1.bf16.msra.mxu0 %v561
      %572 = vmatprep.subr.bf16.mxu0 0
      %573 = vmatpush1.bf16.msra.mxu0 %v560
      %574 = vmatprep.subr.bf16.mxu0 0
      %575 = vmatpush1.bf16.msra.mxu0 %v559
      %576 = vmatprep.subr.bf16.mxu0 0
      %577 = vmatpush1.bf16.msra.mxu0 %v558
      %578 = vmatprep.subr.bf16.mxu0 0
      %579 = vmatpush1.bf16.msra.mxu0 %v557
      %580 = vmatprep.subr.bf16.mxu0 0
      %581 = vmatpush1.bf16.msra.mxu0 %v556
      %582 = vmatprep.subr.bf16.mxu0 0
      %583 = vmatpush1.bf16.msra.mxu0 %v555
      %584 = vmatprep.subr.bf16.mxu0 0
      %585 = vmatpush1.bf16.msra.mxu0 %v554
      %586 = vmatprep.subr.bf16.mxu0 0
      %587 = vmatpush2.bf16.msra.mxu0 0
      %588 = vmatprep.subr.bf16.mxu0 0
      %589 = vmatpush2.bf16.msra.mxu0 0
      %590 = vmatprep.subr.bf16.mxu0 0
      %591 = vmatpush2.bf16.msra.mxu0 0
      %592 = vmatprep.subr.bf16.mxu0 0
      %593 = vmatpush2.bf16.msra.mxu0 0
      %594 = vmatprep.subr.bf16.mxu0 0
      %595 = vmatpush2.bf16.msra.mxu0 0
      %596 = vmatprep.subr.bf16.mxu0 0
      %597 = vmatpush2.bf16.msra.mxu0 0
      %598 = vmatprep.subr.bf16.mxu0 0
      %599 = vmatpush2.bf16.msra.mxu0 0
      %600 = vmatprep.subr.bf16.mxu0 0
      %601 = vmatpush2.bf16.msra.mxu0 0
      %602 = vmatprep.mubr.bf16.mxu0 0
      %603 = vmatmul.mubr.bf16.gmra.mxu0 %v489
      %v604 = vpop.f32.mrf.mxu0
      %v605 = vadd.f32 %v520, %v604
      %v606 = vpop.f32.mrf.mxu0
      %v607 = vpop.f32.mrf.mxu0
      %v608 = vadd.f32 %v520, %v607
      %v609 = vpop.f32.mrf.mxu0
      %610 = vmatprep.mubr.bf16.mxu0 0
      %611 = vmatmul.mubr.bf16.gmra.mxu0 %v490
      %v612 = vpop.f32.mrf.mxu0
      %v613 = vadd.f32 %v520, %v612
      %v614 = vpop.f32.mrf.mxu0
      %v615 = vpop.f32.mrf.mxu0
      %v616 = vadd.f32 %v520, %v615
      %v617 = vpop.f32.mrf.mxu0
      %618 = vmatprep.mubr.bf16.mxu0 0
      %619 = vmatmul.mubr.bf16.gmra.mxu0 %v491
      %v620 = vpop.f32.mrf.mxu0
      %v621 = vadd.f32 %v520, %v620
      %v622 = vpop.f32.mrf.mxu0
      %v623 = vpop.f32.mrf.mxu0
      %v624 = vadd.f32 %v520, %v623
      %v625 = vpop.f32.mrf.mxu0
      %626 = vmatprep.mubr.bf16.mxu0 0
      %627 = vmatmul.mubr.bf16.gmra.mxu0 %v492
      %v628 = vpop.f32.mrf.mxu0
      %v629 = vadd.f32 %v520, %v628
      %v630 = vpop.f32.mrf.mxu0
      %v631 = vpop.f32.mrf.mxu0
      %v632 = vadd.f32 %v520, %v631
      %v633 = vpop.f32.mrf.mxu0
      %634 = vmatprep.mubr.bf16.mxu0 0
      %635 = vmatmul.mubr.bf16.gmra.mxu0 %v493
      %v636 = vpop.f32.mrf.mxu0
      %v637 = vadd.f32 %v520, %v636
      %v638 = vpop.f32.mrf.mxu0
      %v639 = vpop.f32.mrf.mxu0
      %v640 = vadd.f32 %v520, %v639
      %v641 = vpop.f32.mrf.mxu0
      %642 = vmatprep.mubr.bf16.mxu0 0
      %643 = vmatmul.mubr.bf16.gmra.mxu0 %v494
      %v644 = vpop.f32.mrf.mxu0
      %v645 = vadd.f32 %v520, %v644
      %v646 = vpop.f32.mrf.mxu0
      %v647 = vpop.f32.mrf.mxu0
      %v648 = vadd.f32 %v520, %v647
      %v649 = vpop.f32.mrf.mxu0
      %650 = vmatprep.mubr.bf16.mxu0 0
      %651 = vmatmul.mubr.bf16.gmra.mxu0 %v495
      %v652 = vpop.f32.mrf.mxu0
      %v653 = vadd.f32 %v520, %v652
      %v654 = vpop.f32.mrf.mxu0
      %v655 = vpop.f32.mrf.mxu0
      %v656 = vadd.f32 %v520, %v655
      %v657 = vpop.f32.mrf.mxu0
      %658 = vmatprep.mubr.bf16.mxu0 0
      %659 = vmatmul.mubr.bf16.gmra.mxu0 %v496
      %v660 = vpop.f32.mrf.mxu0
      %v661 = vadd.f32 %v520, %v660
      %v662 = vpop.f32.mrf.mxu0
      %v663 = vpop.f32.mrf.mxu0
      %v664 = vadd.f32 %v520, %v663
      %v665 = vpop.f32.mrf.mxu0
      %666 = vmatprep.mubr.bf16.mxu0 0
      %667 = vmatmul.mubr.bf16.gmra.mxu0 %v497
      %v668 = vpop.f32.mrf.mxu0
      %v669 = vadd.f32 %v520, %v668
      %v670 = vpop.f32.mrf.mxu0
      %v671 = vpop.f32.mrf.mxu0
      %v672 = vadd.f32 %v520, %v671
      %v673 = vpop.f32.mrf.mxu0
      %674 = vmatprep.mubr.bf16.mxu0 0
      %675 = vmatmul.mubr.bf16.gmra.mxu0 %v498
      %v676 = vpop.f32.mrf.mxu0
      %v677 = vadd.f32 %v520, %v676
      %v678 = vpop.f32.mrf.mxu0
      %v679 = vpop.f32.mrf.mxu0
      %v680 = vpop.f32.mrf.mxu0
      %681 = vdwg.mxu0
      %v682 = vpack.c.bf16 %v257, %v256
      %v683 = vpack.c.bf16 %v259, %v258
      %v684 = vpack.c.bf16 %v261, %v260
      %v685 = vpack.c.bf16 %v263, %v262
      %v686 = vpack.c.bf16 %v265, %v264
      %v687 = vpack.c.bf16 %v267, %v266
      %v688 = vpack.c.bf16 %v269, %v268
      %v689 = vpack.c.bf16 %v271, %v270
      %v690 = vpack.c.bf16 %v273, %v272
      %v691 = vpack.c.bf16 %v274, %v274
      %v692 = vld [vmem:[%s5] sm:$0xf]
      %v693 = vld [vmem:[%s5 + $0x4] sm:$0xf]
      %v694 = vld [vmem:[%s5 + $0x8] sm:$0xf]
      %v695 = vld [vmem:[%s5 + $0xc] sm:$0xf]
      %v700 = vunpack.c.l.b16 %v692
      %v701 = vunpack.c.l.b16 %v693
      %v702 = vunpack.c.l.b16 %v694
      %v703 = vunpack.c.l.b16 %v695
      %v704 = vpack.c.b16 %v701, %v700
      %v705 = vpack.c.b16 %v703, %v702
      %v709 = vsel %vm327, %v682, 0
      %v712 = vsel %vm327, %v683, 0
      %v715 = vsel %vm327, %v684, 0
      %v718 = vsel %vm327, %v685, 0
      %v721 = vsel %vm327, %v686, 0
      %v724 = vsel %vm327, %v687, 0
      %v727 = vsel %vm327, %v688, 0
      %v730 = vsel %vm327, %v689, 0
      %v733 = vsel %vm327, %v690, 0
      %v736 = vsel %vm327, %v691, 0
      %738 = vmatprep.subr.bf16.mxu0 0
      %739 = vmatpush1.bf16.msra.mxu0 0
      %740 = vmatprep.subr.bf16.mxu0 0
      %741 = vmatpush1.bf16.msra.mxu0 0
      %742 = vmatprep.subr.bf16.mxu0 0
      %743 = vmatpush1.bf16.msra.mxu0 0
      %744 = vmatprep.subr.bf16.mxu0 0
      %745 = vmatpush1.bf16.msra.mxu0 0
      %746 = vmatprep.subr.bf16.mxu0 0
      %747 = vmatpush1.bf16.msra.mxu0 0
      %748 = vmatprep.subr.bf16.mxu0 0
      %749 = vmatpush1.bf16.msra.mxu0 0
      %750 = vmatprep.subr.bf16.mxu0 0
      %751 = vmatpush1.bf16.msra.mxu0 %v705
      %752 = vmatprep.subr.bf16.mxu0 0
      %753 = vmatpush1.bf16.msra.mxu0 %v704
      %754 = vmatprep.subr.bf16.mxu0 0
      %755 = vmatpush2.bf16.msra.mxu0 0
      %756 = vmatprep.subr.bf16.mxu0 0
      %757 = vmatpush2.bf16.msra.mxu0 0
      %758 = vmatprep.subr.bf16.mxu0 0
      %759 = vmatpush2.bf16.msra.mxu0 0
      %760 = vmatprep.subr.bf16.mxu0 0
      %761 = vmatpush2.bf16.msra.mxu0 0
      %762 = vmatprep.subr.bf16.mxu0 0
      %763 = vmatpush2.bf16.msra.mxu0 0
      %764 = vmatprep.subr.bf16.mxu0 0
      %765 = vmatpush2.bf16.msra.mxu0 0
      %766 = vmatprep.subr.bf16.mxu0 0
      %767 = vmatpush2.bf16.msra.mxu0 0
      %768 = vmatprep.subr.bf16.mxu0 0
      %769 = vmatpush2.bf16.msra.mxu0 0
      %770 = vmatprep.mubr.bf16.mxu0 0
      %771 = vmatmul.mubr.bf16.gmra.mxu0 %v709
      %v772 = vpop.f32.mrf.mxu0
      %v773 = vadd.f32 %v605, %v772
      %v774 = vpop.f32.mrf.mxu0
      %v775 = vpop.f32.mrf.mxu0
      %v776 = vadd.f32 %v608, %v775
      %v777 = vpop.f32.mrf.mxu0
      %778 = vmatprep.mubr.bf16.mxu0 0
      %779 = vmatmul.mubr.bf16.gmra.mxu0 %v712
      %v780 = vpop.f32.mrf.mxu0
      %v781 = vadd.f32 %v613, %v780
      %v782 = vpop.f32.mrf.mxu0
      %v783 = vpop.f32.mrf.mxu0
      %v784 = vadd.f32 %v616, %v783
      %v785 = vpop.f32.mrf.mxu0
      %786 = vmatprep.mubr.bf16.mxu0 0
      %787 = vmatmul.mubr.bf16.gmra.mxu0 %v715
      %v788 = vpop.f32.mrf.mxu0
      %v789 = vadd.f32 %v621, %v788
      %v790 = vpop.f32.mrf.mxu0
      %v791 = vpop.f32.mrf.mxu0
      %v792 = vadd.f32 %v624, %v791
      %v793 = vpop.f32.mrf.mxu0
      %794 = vmatprep.mubr.bf16.mxu0 0
      %795 = vmatmul.mubr.bf16.gmra.mxu0 %v718
      %v796 = vpop.f32.mrf.mxu0
      %v797 = vadd.f32 %v629, %v796
      %v798 = vpop.f32.mrf.mxu0
      %v799 = vpop.f32.mrf.mxu0
      %v800 = vadd.f32 %v632, %v799
      %v801 = vpop.f32.mrf.mxu0
      %802 = vmatprep.mubr.bf16.mxu0 0
      %803 = vmatmul.mubr.bf16.gmra.mxu0 %v721
      %v804 = vpop.f32.mrf.mxu0
      %v805 = vadd.f32 %v637, %v804
      %v806 = vpop.f32.mrf.mxu0
      %v807 = vpop.f32.mrf.mxu0
      %v808 = vadd.f32 %v640, %v807
      %v809 = vpop.f32.mrf.mxu0
      %810 = vmatprep.mubr.bf16.mxu0 0
      %811 = vmatmul.mubr.bf16.gmra.mxu0 %v724
      %v812 = vpop.f32.mrf.mxu0
      %v813 = vadd.f32 %v645, %v812
      %v814 = vpop.f32.mrf.mxu0
      %v815 = vpop.f32.mrf.mxu0
      %v816 = vadd.f32 %v648, %v815
      %v817 = vpop.f32.mrf.mxu0
      %818 = vmatprep.mubr.bf16.mxu0 0
      %819 = vmatmul.mubr.bf16.gmra.mxu0 %v727
      %v820 = vpop.f32.mrf.mxu0
      %v821 = vadd.f32 %v653, %v820
      %v822 = vpop.f32.mrf.mxu0
      %v823 = vpop.f32.mrf.mxu0
      %v824 = vadd.f32 %v656, %v823
      %v825 = vpop.f32.mrf.mxu0
      %826 = vmatprep.mubr.bf16.mxu0 0
      %827 = vmatmul.mubr.bf16.gmra.mxu0 %v730
      %v828 = vpop.f32.mrf.mxu0
      %v829 = vadd.f32 %v661, %v828
      %v830 = vpop.f32.mrf.mxu0
      %v831 = vpop.f32.mrf.mxu0
      %v832 = vadd.f32 %v664, %v831
      %v833 = vpop.f32.mrf.mxu0
      %834 = vmatprep.mubr.bf16.mxu0 0
      %835 = vmatmul.mubr.bf16.gmra.mxu0 %v733
      %v836 = vpop.f32.mrf.mxu0
      %v837 = vadd.f32 %v669, %v836
      %v838 = vpop.f32.mrf.mxu0
      %v839 = vpop.f32.mrf.mxu0
      %v840 = vadd.f32 %v672, %v839
      %v841 = vpop.f32.mrf.mxu0
      %842 = vmatprep.mubr.bf16.mxu0 0
      %843 = vmatmul.mubr.bf16.gmra.mxu0 %v736
      %v844 = vpop.f32.mrf.mxu0
      %v845 = vadd.f32 %v677, %v844
      %v846 = vpop.f32.mrf.mxu0
      %v847 = vpop.f32.mrf.mxu0
      %v848 = vpop.f32.mrf.mxu0
      %849 = vdwg.mxu0
      %vm850 = vcmask 392192
      %851 = vst.msk [vmem:[%s253] sm:$0xff] %vm850, %v773
      %852 = vst.msk [vmem:[%s253 + $0x8] sm:$0xff] %vm850, %v776
      %853 = vst.msk [vmem:[%s253 + $0x10] sm:$0xff] %vm850, %v781
      %854 = vst.msk [vmem:[%s253 + $0x18] sm:$0xff] %vm850, %v784
      %855 = vst.msk [vmem:[%s253 + $0x20] sm:$0xff] %vm850, %v789
      %856 = vst.msk [vmem:[%s253 + $0x28] sm:$0xff] %vm850, %v792
      %857 = vst.msk [vmem:[%s253 + $0x30] sm:$0xff] %vm850, %v797
      %858 = vst.msk [vmem:[%s253 + $0x38] sm:$0xff] %vm850, %v800
      %859 = vst.msk [vmem:[%s253 + $0x40] sm:$0xff] %vm850, %v805
      %860 = vst.msk [vmem:[%s253 + $0x48] sm:$0xff] %vm850, %v808
      %861 = vst.msk [vmem:[%s253 + $0x50] sm:$0xff] %vm850, %v813
      %862 = vst.msk [vmem:[%s253 + $0x58] sm:$0xff] %vm850, %v816
      %863 = vst.msk [vmem:[%s253 + $0x60] sm:$0xff] %vm850, %v821
      %864 = vst.msk [vmem:[%s253 + $0x68] sm:$0xff] %vm850, %v824
      %865 = vst.msk [vmem:[%s253 + $0x70] sm:$0xff] %vm850, %v829
      %866 = vst.msk [vmem:[%s253 + $0x78] sm:$0xff] %vm850, %v832
      %867 = vst.msk [vmem:[%s253 + $0x80] sm:$0xff] %vm850, %v837
      %868 = vst.msk [vmem:[%s253 + $0x88] sm:$0xff] %vm850, %v840
      %869 = vst.msk [vmem:[%s253 + $0x90] sm:$0xff] %vm850, %v845
      %s870 = smul.u32 19, %s17
      %p871 = scmp.lt.s32.totalorder %s870, 37
      %s872 = scalar_select %p871, %s870, 37
      %s873 = smul.addr %s872, 8
      %s874 = scalar_lea.vmem %s6, %s873
      // Predicated region
      $region45: #{tpu_custom_call.1} parent=43 // pred_check
        %p875 = pneg %p166
      $region46: #{tpu_custom_call.1} parent=43 // pred_check_branch
        %877 = sbr.rel (%p875) target = $region48
      $region47: #{tpu_custom_call.1} parent=43 // pred_region
        %s878 = smul.u32 19, %s17
      $region48: #{tpu_custom_call.1} parent=43 // pred_fallthru
        _
    $region44: #{tpu_custom_call.1} parent=5 // pred_fallthru
      _
    %p879 = scmp.le.s32.totalorder 2, %s12
    // Predicated region
    $region49: #{tpu_custom_call.1} parent=5 // pred_check
      %p880 = pneg %p879
    $region50: #{tpu_custom_call.1} parent=5 // pred_check_branch
      %882 = sbr.rel (%p880) target = $region52
    $region51: #{tpu_custom_call.1} parent=5 // pred_region
      %s883 = ssub.s32 %s12, 2
      // Predicated region
      $region53: #{tpu_custom_call.1} parent=51 // pred_check
        %p884 = pneg %p172
      $region54: #{tpu_custom_call.1} parent=51 // pred_check_branch
        %886 = sbr.rel (%p884) target = $region56
      $region55: #{tpu_custom_call.1} parent=51 // pred_region
        %s887 = smul.u32 19, %s18
        %p888 = scmp.lt.s32.totalorder %s887, 37
        %s889 = scalar_select %p888, %s887, 37
        %s890 = smul.addr %s889, 8
        %s891 = scalar_lea.vmem %s6, %s890
      $region56: #{tpu_custom_call.1} parent=51 // pred_fallthru
        _
    $region52: #{tpu_custom_call.1} parent=5 // pred_fallthru
      _
  $region6: #{tpu_custom_call.1} parent=0 // loop_footer
    %s16 = sadd.s32 1, %s12
  $region7: #{tpu_custom_call.1} parent=0 // loop_footer_branch
    %11 = sbr.rel target = $region3
  $region8: #{tpu_custom_call.1} parent=0 // loop_exit
    _

</llo_original>
